<compile_context>
chip_gen: v6e
topology: v6e:2x2x1
jax: 0.10.0
libtpu: 0.0.40
codegen_flags: <defaults>
</compile_context>

<pallas_src>
import jax
import jax.numpy as jnp
from jax import lax
from jax.experimental import pallas as pl
from jax.experimental.pallas import tpu as pltpu


def _round_up(x, m):
    return ((x + m - 1) // m) * m


def _make_kernel(peel_first_step: bool, unroll):
    """Builds the per-(batch-block, time-chunk) kernel body.

    peel_first_step is statically True when the whole sequence is one chunk, so
    local step 0 is global t=0 (h == 0  =>  h = sigmoid(w_i x_0 + b_i)).
    """

    def kernel(x_ref, wx_ref, bx_ref, wh_ref, wo_ref, bo_ref,
               out_ref, hfin_ref,
               xproj_ref, hseq_ref, h_ref):
        # x_ref:     (Tc*Bb, D_in)   rows ordered (t_local, batch_local)
        # wx_ref:    (D_in, 3*Hp)  = [w1x | w2x | wi], each gate padded to Hp lanes
        # bx_ref:    (1, 3*Hp)     = [b1 | b2 | bi]
        # wh_ref:    (Hp, 2*Hp)    = [w1h | w2h]
        # wo_ref:    (Hp, Dp) ; bo_ref: (1, Dp)
        # out_ref:   (Tc*Bb, Dp) ; hfin_ref: (Bb, Hp)
        # xproj_ref: (Tc*Bb, 3*Hp) ; hseq_ref: (Tc*Bb, Hp) ; h_ref: (Bb, Hp)
        j = pl.program_id(1)
        Bb, Hp = h_ref.shape
        Tc = x_ref.shape[0] // Bb

        # Hoisted: every x-dependent projection of the chunk in one MXU matmul.
        xproj_ref[...] = (
            jnp.dot(x_ref[...], wx_ref[...], preferred_element_type=jnp.float32)
            + bx_ref[...])

        def step(t, h):
            row = pl.multiple_of(t * Bb, Bb)
            xp = xproj_ref[pl.ds(row, Bb), :]                      # (Bb, 3Hp)
            # h_1 == h_2 == h -> one tanh, one fused (Hp, 2Hp) matmul per step.
            # TODO(synk): could hold wh resident in the MXU via matmul_push_rhs /
            # matmul_acc_lhs; kept jnp.dot for portability across v5e/v6e/v7x.
            hp = jnp.dot(jnp.tanh(h), wh_ref[...],
                         preferred_element_type=jnp.float32)       # (Bb, 2Hp)
            g1 = jnp.tanh(xp[:, :Hp] + hp[:, :Hp])                 # 128-aligned slices
            g2 = jnp.tanh(xp[:, Hp:2 * Hp] + hp[:, Hp:])
            h_new = jax.nn.sigmoid((g1 + g2) * h + xp[:, 2 * Hp:])
            hseq_ref[pl.ds(row, Bb), :] = h_new
            return h_new

        if peel_first_step:
            # Global t == 0: h == 0 => tanh(h) == 0 and (g1+g2)*h == 0.
            h0 = jax.nn.sigmoid(xproj_ref[pl.ds(0, Bb), pl.ds(2 * Hp, Hp)])
            hseq_ref[pl.ds(0, Bb), :] = h0
            h_last = lax.fori_loop(1, Tc, step, h0, unroll=unroll)
        else:
            @pl.when(j == 0)
            def _init():
                h_ref[...] = jnp.zeros_like(h_ref)
            h_last = lax.fori_loop(0, Tc, step, h_ref[...], unroll=unroll)

        h_ref[...] = h_last

        # Output projection for the whole chunk: one lane-dense matmul + store.
        out_ref[...] = jnp.tanh(
            jnp.dot(hseq_ref[...], wo_ref[...], preferred_element_type=jnp.float32)
            + bo_ref[...])

        @pl.when(j == pl.num_programs(1) - 1)
        def _final():
            hfin_ref[...] = h_ref[...]

    return kernel


def hor_forward(x, params, *, batch_block=None, time_chunk=None):
    """x: (T, B, input_dim) f32. Returns (out (T,B,output_dim), h (B,hidden_dim))."""
    T, B, D_in = x.shape
    H = params["w1h"].shape[0]
    D_out = params["wo"].shape[1]
    f32 = jnp.float32

    # ---- lane/sublane padding: lane-dense tiles, tile-aligned gate slices ----
    Hp = _round_up(H, 128)
    Dp = _round_up(D_out, 128)
    B_pad = _round_up(B, 8)

    # ---- batch blocks (grid axis 0, "parallel": megacore sharding on v7x) ----
    if batch_block is None:
        batch_block = B_pad // 2 if (B_pad % 16 == 0) else B_pad
    assert B_pad % batch_block == 0 and batch_block % 8 == 0
    Bb = batch_block
    nb = B_pad // Bb

    # ---- time chunks (grid axis 1, "arbitrary": bounds VMEM, pipelines x) ----
    if time_chunk is None:
        per_step = 4 * Bb * (2 * D_in + 2 * Dp + 3 * Hp + Hp)
        budget = 24 << 20
        time_chunk = 1
        for d in range(1, T + 1):
            if T % d == 0 and d * per_step <= budget:
                time_chunk = d
    assert T % time_chunk == 0
    Tc = time_chunk
    nt = T // Tc

    # ---- fuse + zero-pad weights once (wrapper-side, outside the recurrence) -
    wx = jnp.zeros((D_in, 3 * Hp), f32)
    wx = wx.at[:, 0:H].set(params["w1x"])
    wx = wx.at[:, Hp:Hp + H].set(params["w2x"])
    wx = wx.at[:, 2 * Hp:2 * Hp + H].set(params["wi"])
    bx = jnp.zeros((1, 3 * Hp), f32)
    bx = bx.at[:, 0:H].set(params["b1"])
    bx = bx.at[:, Hp:Hp + H].set(params["b2"])
    bx = bx.at[:, 2 * Hp:2 * Hp + H].set(params["bi"])
    wh = jnp.zeros((Hp, 2 * Hp), f32)
    wh = wh.at[:H, 0:H].set(params["w1h"])
    wh = wh.at[:H, Hp:Hp + H].set(params["w2h"])
    wo = jnp.zeros((Hp, Dp), f32).at[:H, :D_out].set(params["wo"])
    bo = jnp.zeros((1, Dp), f32).at[:, :D_out].set(params["bo"])

    # ---- x -> (nb, nt, Tc*Bb, D_in), rows ordered (t_local, batch_local) -----
    x_p = jnp.zeros((T, B_pad, D_in), f32).at[:, :B, :].set(x)
    xb = (x_p.reshape(nt, Tc, nb, Bb, D_in)
              .transpose(2, 0, 1, 3, 4)
              .reshape(nb, nt, Tc * Bb, D_in))

    # ---- explicit VMEM budget sized from the working set ---------------------
    est = (2 * 4 * Tc * Bb * (D_in + Dp)                                   # x/out blocks (double-buffered)
           + 2 * 4 * Bb * Hp                                               # hfinal block
           + 2 * 4 * (D_in * 3 * Hp + 3 * Hp + Hp * 2 * Hp + Hp * Dp + Dp)  # weights
           + 4 * (Tc * Bb * 3 * Hp + Tc * Bb * Hp + Bb * Hp))              # scratch
    vmem_limit = int(min(56 << 20, max(2 * est + (8 << 20), 16 << 20)))

    unroll = True if Tc <= 16 else 8
    kernel = _make_kernel(peel_first_step=(nt == 1), unroll=unroll)

    out_b, hfin_b = pl.pallas_call(
        kernel,
        out_shape=(jax.ShapeDtypeStruct((nb, nt, Tc * Bb, Dp), f32),
                   jax.ShapeDtypeStruct((nb, Bb, Hp), f32)),
        grid_spec=pltpu.PrefetchScalarGridSpec(
            num_scalar_prefetch=0,
            grid=(nb, nt),
            in_specs=[
                pl.BlockSpec((None, None, Tc * Bb, D_in), lambda i, j: (i, j, 0, 0)),
                pl.BlockSpec((D_in, 3 * Hp), lambda i, j: (0, 0)),
                pl.BlockSpec((1, 3 * Hp), lambda i, j: (0, 0)),
                pl.BlockSpec((Hp, 2 * Hp), lambda i, j: (0, 0)),
                pl.BlockSpec((Hp, Dp), lambda i, j: (0, 0)),
                pl.BlockSpec((1, Dp), lambda i, j: (0, 0)),
            ],
            out_specs=[
                pl.BlockSpec((None, None, Tc * Bb, Dp), lambda i, j: (i, j, 0, 0)),
                pl.BlockSpec((None, Bb, Hp), lambda i, j: (i, 0, 0)),
            ],
            scratch_shapes=[
                pltpu.VMEM((Tc * Bb, 3 * Hp), f32),   # hoisted x projections (chunk)
                pltpu.VMEM((Tc * Bb, Hp), f32),       # h_t sequence (chunk)
                pltpu.VMEM((Bb, Hp), f32),            # carried hidden state
            ],
        ),
        compiler_params=pltpu.CompilerParams(
            dimension_semantics=("parallel", "arbitrary"),
            vmem_limit_bytes=vmem_limit,
        ),
    )(xb, wx, bx, wh, wo, bo)

    out = (out_b.reshape(nb, nt, Tc, Bb, Dp)
                 .transpose(1, 2, 0, 3, 4)
                 .reshape(T, B_pad, Dp))[:, :B, :D_out]
    h_final = hfin_b.reshape(B_pad, Hp)[:B, :H]
    return out, h_final


def reference_forward(x, params):
    """Pure-JAX reference mimicking the PyTorch forward exactly."""
    T, B, _ = x.shape
    H = params["w1h"].shape[0]
    h1 = jnp.zeros((B, H), jnp.float32)
    h2 = jnp.zeros((B, H), jnp.float32)
    outs = []
    for t in range(T):
        xt = x[t]
        g1 = jnp.tanh(xt @ params["w1x"] + jnp.tanh(h1) @ params["w1h"] + params["b1"])
        g2 = jnp.tanh(xt @ params["w2x"] + jnp.tanh(h2) @ params["w2h"] + params["b2"])
        h = jax.nn.sigmoid(g1 * h1 + g2 * h2 + xt @ params["wi"] + params["bi"])
        h1 = h
        h2 = h1
        outs.append(jnp.tanh(h @ params["wo"] + params["bo"]))
    return jnp.stack(outs, axis=0), h1


def init_params(key, input_dim, hidden_dim, output_dim):
    """Deterministic synthetic init (PyTorch Linear-style uniform ±1/sqrt(fan_in))."""
    ks = jax.random.split(key, 8)

    def lin(k, fan_in, fan_out):
        bound = 1.0 / jnp.sqrt(fan_in)
        kw, kb = jax.random.split(k)
        w = jax.random.uniform(kw, (fan_in, fan_out), jnp.float32, -bound, bound)
        b = jax.random.uniform(kb, (1, fan_out), jnp.float32, -bound, bound)
        return w, b

    wi, bi = lin(ks[0], input_dim, hidden_dim)
    # w_1 / w_2 act on cat([x, tanh(h)]) => fan_in = input_dim + hidden_dim; split.
    w1_full, b1 = lin(ks[1], hidden_dim + input_dim, hidden_dim)
    w2_full, b2 = lin(ks[2], hidden_dim + input_dim, hidden_dim)
    wo, bo = lin(ks[3], hidden_dim, output_dim)
    return {
        "wi": wi, "bi": bi,
        "w1x": w1_full[:input_dim], "w1h": w1_full[input_dim:], "b1": b1,
        "w2x": w2_full[:input_dim], "w2h": w2_full[input_dim:], "b2": b2,
        "wo": wo, "bo": bo,
    }


if __name__ == "__main__":
    input_dim, hidden_dim, output_dim = 8, 32, 16

    key = jax.random.PRNGKey(0)
    k_x1, k_x2, k_p = jax.random.split(key, 3)
    params = init_params(k_p, input_dim, hidden_dim, output_dim)

    # Config 1: single chunk / single batch block (exercises the peeled first step).
    T1, B1 = 8, 8
    x1 = jax.random.normal(k_x1, (T1, B1, input_dim), jnp.float32)
    out1, h1 = jax.block_until_ready(hor_forward(x1, params))
    out1_ref, h1_ref = reference_forward(x1, params)
    assert out1.shape == (T1, B1, output_dim)
    assert h1.shape == (B1, hidden_dim)
    assert jnp.allclose(out1, out1_ref, atol=1e-5, rtol=1e-5)
    assert jnp.allclose(h1, h1_ref, atol=1e-5, rtol=1e-5)

    # Config 2: 2 batch blocks ("parallel") x 2 time chunks ("arbitrary" carry).
    T2, B2 = 8, 16
    x2 = jax.random.normal(k_x2, (T2, B2, input_dim), jnp.float32)
    out2, h2 = jax.block_until_ready(hor_forward(x2, params, time_chunk=4))
    out2_ref, h2_ref = reference_forward(x2, params)
    assert jnp.allclose(out2, out2_ref, atol=1e-5, rtol=1e-5)
    assert jnp.allclose(h2, h2_ref, atol=1e-5, rtol=1e-5)

    print("KERNEL_OK")
</pallas_src>

<mosaic_0001>
module attributes {stable_mosaic.version = 11 : i64} {
  func.func @kernel(%arg0: i32, %arg1: i32, %arg2: memref<1x1x64x8xf32, #tpu.memory_space<vmem>>, %arg3: memref<8x384xf32, #tpu.memory_space<vmem>>, %arg4: memref<1x384xf32, #tpu.memory_space<vmem>>, %arg5: memref<128x256xf32, #tpu.memory_space<vmem>>, %arg6: memref<128x128xf32, #tpu.memory_space<vmem>>, %arg7: memref<1x128xf32, #tpu.memory_space<vmem>>, %arg8: memref<1x1x64x128xf32, #tpu.memory_space<vmem>>, %arg9: memref<1x8x128xf32, #tpu.memory_space<vmem>>, %arg10: memref<64x384xf32, #tpu.memory_space<vmem>>, %arg11: memref<64x128xf32, #tpu.memory_space<vmem>>, %arg12: memref<8x128xf32, #tpu.memory_space<vmem>>) attributes {dimension_semantics = [#tpu.dimension_semantics<parallel>, #tpu.dimension_semantics<arbitrary>], iteration_bounds = array<i64: 1, 1>, scalar_prefetch = 0 : i64, scratch_operands = 3 : i64, tpu.core_type = #tpu.core_type<tc>, window_params = [{transform_indices = @transform_0, window_bounds = array<i64: 1, 1, 64, 8>}, {pipeline_mode = #tpu.pipeline_mode<synchronous>, transform_indices = @transform_1, window_bounds = array<i64: 8, 384>}, {pipeline_mode = #tpu.pipeline_mode<synchronous>, transform_indices = @transform_2, window_bounds = array<i64: 1, 384>}, {pipeline_mode = #tpu.pipeline_mode<synchronous>, transform_indices = @transform_3, window_bounds = array<i64: 128, 256>}, {pipeline_mode = #tpu.pipeline_mode<synchronous>, transform_indices = @transform_4, window_bounds = array<i64: 128, 128>}, {pipeline_mode = #tpu.pipeline_mode<synchronous>, transform_indices = @transform_5, window_bounds = array<i64: 1, 128>}, {transform_indices = @transform_6, window_bounds = array<i64: 1, 1, 64, 128>}, {transform_indices = @transform_7, window_bounds = array<i64: 1, 8, 128>}]} {
    %c0 = arith.constant 0 : index
    %c0_0 = arith.constant 0 : index
    %c0_1 = arith.constant 0 : index
    %c0_2 = arith.constant 0 : index
    %0 = vector.load %arg2[%c0, %c0_0, %c0_1, %c0_2] : memref<1x1x64x8xf32, #tpu.memory_space<vmem>>, vector<1x1x64x8xf32>
    %1 = vector.shape_cast %0 : vector<1x1x64x8xf32> to vector<64x8xf32>
    %c0_3 = arith.constant 0 : index
    %c0_4 = arith.constant 0 : index
    %2 = vector.load %arg3[%c0_3, %c0_4] : memref<8x384xf32, #tpu.memory_space<vmem>>, vector<8x384xf32>
    %cst = arith.constant dense<0.000000e+00> : vector<64x384xf32>
    %3 = tpu.matmul %1, %2, %cst {dimension_numbers = #tpu.dot_dimension_numbers<[1], [0], [0], [1], [0, 0, 1, 1], [], []>} : vector<64x8xf32>, vector<8x384xf32>, vector<64x384xf32> -> vector<64x384xf32>
    %c0_5 = arith.constant 0 : index
    %c0_6 = arith.constant 0 : index
    %4 = vector.load %arg4[%c0_5, %c0_6] : memref<1x384xf32, #tpu.memory_space<vmem>>, vector<1x384xf32>
    %5 = vector.broadcast %4 : vector<1x384xf32> to vector<64x384xf32>
    %6 = arith.addf %3, %5 : vector<64x384xf32>
    %c0_7 = arith.constant 0 : index
    %c0_8 = arith.constant 0 : index
    %7 = vector.load %arg10[%c0_7, %c0_8] : memref<64x384xf32, #tpu.memory_space<vmem>>, vector<64x384xf32>
    tpu.vector_store %arg10[%c0_7, %c0_8], %6 {strides = array<i32>} : memref<64x384xf32, #tpu.memory_space<vmem>>, vector<64x384xf32>,
    %c0_9 = arith.constant 0 : index
    %c256 = arith.constant 256 : index
    %8 = vector.load %arg10[%c0_9, %c256] : memref<64x384xf32, #tpu.memory_space<vmem>>, vector<8x128xf32>
    %9 = arith.negf %8 : vector<8x128xf32>
    %10 = math.exp %9 : vector<8x128xf32>
    %cst_10 = arith.constant 1.000000e+00 : f32
    %11 = vector.broadcast %cst_10 : f32 to vector<8x128xf32>
    %12 = arith.addf %11, %10 : vector<8x128xf32>
    %13 = arith.divf %11, %12 : vector<8x128xf32>
    %c0_11 = arith.constant 0 : index
    %c0_12 = arith.constant 0 : index
    %14 = vector.load %arg11[%c0_11, %c0_12] : memref<64x128xf32, #tpu.memory_space<vmem>>, vector<8x128xf32>
    tpu.vector_store %arg11[%c0_11, %c0_12], %13 {strides = array<i32>} : memref<64x128xf32, #tpu.memory_space<vmem>>, vector<8x128xf32>,
    %c1_i32 = arith.constant 1 : i32
    %c8_i32 = arith.constant 8 : i32
    %15 = arith.muli %c1_i32, %c8_i32 : i32
    %16 = tpu.assume_multiple %15, 8 : i32
    %17 = arith.index_cast %16 : i32 to index
    %c0_13 = arith.constant 0 : index
    %18 = vector.load %arg10[%17, %c0_13] : memref<64x384xf32, #tpu.memory_space<vmem>>, vector<8x384xf32>
    %19 = math.tanh %13 : vector<8x128xf32>
    %c0_14 = arith.constant 0 : index
    %c0_15 = arith.constant 0 : index
    %20 = vector.load %arg5[%c0_14, %c0_15] : memref<128x256xf32, #tpu.memory_space<vmem>>, vector<128x256xf32>
    %cst_16 = arith.constant dense<0.000000e+00> : vector<8x256xf32>
    %21 = tpu.matmul %19, %20, %cst_16 {dimension_numbers = #tpu.dot_dimension_numbers<[1], [0], [0], [1], [0, 0, 1, 1], [], []>} : vector<8x128xf32>, vector<128x256xf32>, vector<8x256xf32> -> vector<8x256xf32>
    %22 = vector.extract_strided_slice %18 {offsets = [0, 0], sizes = [8, 128], strides = [1, 1]} : vector<8x384xf32> to vector<8x128xf32>
    %23 = vector.extract_strided_slice %21 {offsets = [0, 0], sizes = [8, 128], strides = [1, 1]} : vector<8x256xf32> to vector<8x128xf32>
    %24 = arith.addf %22, %23 : vector<8x128xf32>
    %25 = math.tanh %24 : vector<8x128xf32>
    %26 = vector.extract_strided_slice %18 {offsets = [0, 128], sizes = [8, 128], strides = [1, 1]} : vector<8x384xf32> to vector<8x128xf32>
    %27 = vector.extract_strided_slice %21 {offsets = [0, 128], sizes = [8, 128], strides = [1, 1]} : vector<8x256xf32> to vector<8x128xf32>
    %28 = arith.addf %26, %27 : vector<8x128xf32>
    %29 = math.tanh %28 : vector<8x128xf32>
    %30 = arith.addf %25, %29 : vector<8x128xf32>
    %31 = arith.mulf %30, %13 : vector<8x128xf32>
    %32 = vector.extract_strided_slice %18 {offsets = [0, 256], sizes = [8, 128], strides = [1, 1]} : vector<8x384xf32> to vector<8x128xf32>
    %33 = arith.addf %31, %32 : vector<8x128xf32>
    %34 = arith.negf %33 : vector<8x128xf32>
    %35 = math.exp %34 : vector<8x128xf32>
    %cst_17 = arith.constant 1.000000e+00 : f32
    %36 = vector.broadcast %cst_17 : f32 to vector<8x128xf32>
    %37 = arith.addf %36, %35 : vector<8x128xf32>
    %38 = arith.divf %36, %37 : vector<8x128xf32>
    %39 = arith.index_cast %16 : i32 to index
    %c0_18 = arith.constant 0 : index
    %40 = vector.load %arg11[%39, %c0_18] : memref<64x128xf32, #tpu.memory_space<vmem>>, vector<8x128xf32>
    tpu.vector_store %arg11[%39, %c0_18], %38 {strides = array<i32>} : memref<64x128xf32, #tpu.memory_space<vmem>>, vector<8x128xf32>,
    %c2_i32 = arith.constant 2 : i32
    %c8_i32_19 = arith.constant 8 : i32
    %41 = arith.muli %c2_i32, %c8_i32_19 : i32
    %42 = tpu.assume_multiple %41, 8 : i32
    %43 = arith.index_cast %42 : i32 to index
    %c0_20 = arith.constant 0 : index
    %44 = vector.load %arg10[%43, %c0_20] : memref<64x384xf32, #tpu.memory_space<vmem>>, vector<8x384xf32>
    %45 = math.tanh %38 : vector<8x128xf32>
    %c0_21 = arith.constant 0 : index
    %c0_22 = arith.constant 0 : index
    %46 = vector.load %arg5[%c0_21, %c0_22] : memref<128x256xf32, #tpu.memory_space<vmem>>, vector<128x256xf32>
    %cst_23 = arith.constant dense<0.000000e+00> : vector<8x256xf32>
    %47 = tpu.matmul %45, %46, %cst_23 {dimension_numbers = #tpu.dot_dimension_numbers<[1], [0], [0], [1], [0, 0, 1, 1], [], []>} : vector<8x128xf32>, vector<128x256xf32>, vector<8x256xf32> -> vector<8x256xf32>
    %48 = vector.extract_strided_slice %44 {offsets = [0, 0], sizes = [8, 128], strides = [1, 1]} : vector<8x384xf32> to vector<8x128xf32>
    %49 = vector.extract_strided_slice %47 {offsets = [0, 0], sizes = [8, 128], strides = [1, 1]} : vector<8x256xf32> to vector<8x128xf32>
    %50 = arith.addf %48, %49 : vector<8x128xf32>
    %51 = math.tanh %50 : vector<8x128xf32>
    %52 = vector.extract_strided_slice %44 {offsets = [0, 128], sizes = [8, 128], strides = [1, 1]} : vector<8x384xf32> to vector<8x128xf32>
    %53 = vector.extract_strided_slice %47 {offsets = [0, 128], sizes = [8, 128], strides = [1, 1]} : vector<8x256xf32> to vector<8x128xf32>
    %54 = arith.addf %52, %53 : vector<8x128xf32>
    %55 = math.tanh %54 : vector<8x128xf32>
    %56 = arith.addf %51, %55 : vector<8x128xf32>
    %57 = arith.mulf %56, %38 : vector<8x128xf32>
    %58 = vector.extract_strided_slice %44 {offsets = [0, 256], sizes = [8, 128], strides = [1, 1]} : vector<8x384xf32> to vector<8x128xf32>
    %59 = arith.addf %57, %58 : vector<8x128xf32>
    %60 = arith.negf %59 : vector<8x128xf32>
    %61 = math.exp %60 : vector<8x128xf32>
    %cst_24 = arith.constant 1.000000e+00 : f32
    %62 = vector.broadcast %cst_24 : f32 to vector<8x128xf32>
    %63 = arith.addf %62, %61 : vector<8x128xf32>
    %64 = arith.divf %62, %63 : vector<8x128xf32>
    %65 = arith.index_cast %42 : i32 to index
    %c0_25 = arith.constant 0 : index
    %66 = vector.load %arg11[%65, %c0_25] : memref<64x128xf32, #tpu.memory_space<vmem>>, vector<8x128xf32>
    tpu.vector_store %arg11[%65, %c0_25], %64 {strides = array<i32>} : memref<64x128xf32, #tpu.memory_space<vmem>>, vector<8x128xf32>,
    %c3_i32 = arith.constant 3 : i32
    %c8_i32_26 = arith.constant 8 : i32
    %67 = arith.muli %c3_i32, %c8_i32_26 : i32
    %68 = tpu.assume_multiple %67, 8 : i32
    %69 = arith.index_cast %68 : i32 to index
    %c0_27 = arith.constant 0 : index
    %70 = vector.load %arg10[%69, %c0_27] : memref<64x384xf32, #tpu.memory_space<vmem>>, vector<8x384xf32>
    %71 = math.tanh %64 : vector<8x128xf32>
    %c0_28 = arith.constant 0 : index
    %c0_29 = arith.constant 0 : index
    %72 = vector.load %arg5[%c0_28, %c0_29] : memref<128x256xf32, #tpu.memory_space<vmem>>, vector<128x256xf32>
    %cst_30 = arith.constant dense<0.000000e+00> : vector<8x256xf32>
    %73 = tpu.matmul %71, %72, %cst_30 {dimension_numbers = #tpu.dot_dimension_numbers<[1], [0], [0], [1], [0, 0, 1, 1], [], []>} : vector<8x128xf32>, vector<128x256xf32>, vector<8x256xf32> -> vector<8x256xf32>
    %74 = vector.extract_strided_slice %70 {offsets = [0, 0], sizes = [8, 128], strides = [1, 1]} : vector<8x384xf32> to vector<8x128xf32>
    %75 = vector.extract_strided_slice %73 {offsets = [0, 0], sizes = [8, 128], strides = [1, 1]} : vector<8x256xf32> to vector<8x128xf32>
    %76 = arith.addf %74, %75 : vector<8x128xf32>
    %77 = math.tanh %76 : vector<8x128xf32>
    %78 = vector.extract_strided_slice %70 {offsets = [0, 128], sizes = [8, 128], strides = [1, 1]} : vector<8x384xf32> to vector<8x128xf32>
    %79 = vector.extract_strided_slice %73 {offsets = [0, 128], sizes = [8, 128], strides = [1, 1]} : vector<8x256xf32> to vector<8x128xf32>
    %80 = arith.addf %78, %79 : vector<8x128xf32>
    %81 = math.tanh %80 : vector<8x128xf32>
    %82 = arith.addf %77, %81 : vector<8x128xf32>
    %83 = arith.mulf %82, %64 : vector<8x128xf32>
    %84 = vector.extract_strided_slice %70 {offsets = [0, 256], sizes = [8, 128], strides = [1, 1]} : vector<8x384xf32> to vector<8x128xf32>
    %85 = arith.addf %83, %84 : vector<8x128xf32>
    %86 = arith.negf %85 : vector<8x128xf32>
    %87 = math.exp %86 : vector<8x128xf32>
    %cst_31 = arith.constant 1.000000e+00 : f32
    %88 = vector.broadcast %cst_31 : f32 to vector<8x128xf32>
    %89 = arith.addf %88, %87 : vector<8x128xf32>
    %90 = arith.divf %88, %89 : vector<8x128xf32>
    %91 = arith.index_cast %68 : i32 to index
    %c0_32 = arith.constant 0 : index
    %92 = vector.load %arg11[%91, %c0_32] : memref<64x128xf32, #tpu.memory_space<vmem>>, vector<8x128xf32>
    tpu.vector_store %arg11[%91, %c0_32], %90 {strides = array<i32>} : memref<64x128xf32, #tpu.memory_space<vmem>>, vector<8x128xf32>,
    %c4_i32 = arith.constant 4 : i32
    %c8_i32_33 = arith.constant 8 : i32
    %93 = arith.muli %c4_i32, %c8_i32_33 : i32
    %94 = tpu.assume_multiple %93, 8 : i32
    %95 = arith.index_cast %94 : i32 to index
    %c0_34 = arith.constant 0 : index
    %96 = vector.load %arg10[%95, %c0_34] : memref<64x384xf32, #tpu.memory_space<vmem>>, vector<8x384xf32>
    %97 = math.tanh %90 : vector<8x128xf32>
    %c0_35 = arith.constant 0 : index
    %c0_36 = arith.constant 0 : index
    %98 = vector.load %arg5[%c0_35, %c0_36] : memref<128x256xf32, #tpu.memory_space<vmem>>, vector<128x256xf32>
    %cst_37 = arith.constant dense<0.000000e+00> : vector<8x256xf32>
    %99 = tpu.matmul %97, %98, %cst_37 {dimension_numbers = #tpu.dot_dimension_numbers<[1], [0], [0], [1], [0, 0, 1, 1], [], []>} : vector<8x128xf32>, vector<128x256xf32>, vector<8x256xf32> -> vector<8x256xf32>
    %100 = vector.extract_strided_slice %96 {offsets = [0, 0], sizes = [8, 128], strides = [1, 1]} : vector<8x384xf32> to vector<8x128xf32>
    %101 = vector.extract_strided_slice %99 {offsets = [0, 0], sizes = [8, 128], strides = [1, 1]} : vector<8x256xf32> to vector<8x128xf32>
    %102 = arith.addf %100, %101 : vector<8x128xf32>
    %103 = math.tanh %102 : vector<8x128xf32>
    %104 = vector.extract_strided_slice %96 {offsets = [0, 128], sizes = [8, 128], strides = [1, 1]} : vector<8x384xf32> to vector<8x128xf32>
    %105 = vector.extract_strided_slice %99 {offsets = [0, 128], sizes = [8, 128], strides = [1, 1]} : vector<8x256xf32> to vector<8x128xf32>
    %106 = arith.addf %104, %105 : vector<8x128xf32>
    %107 = math.tanh %106 : vector<8x128xf32>
    %108 = arith.addf %103, %107 : vector<8x128xf32>
    %109 = arith.mulf %108, %90 : vector<8x128xf32>
    %110 = vector.extract_strided_slice %96 {offsets = [0, 256], sizes = [8, 128], strides = [1, 1]} : vector<8x384xf32> to vector<8x128xf32>
    %111 = arith.addf %109, %110 : vector<8x128xf32>
    %112 = arith.negf %111 : vector<8x128xf32>
    %113 = math.exp %112 : vector<8x128xf32>
    %cst_38 = arith.constant 1.000000e+00 : f32
    %114 = vector.broadcast %cst_38 : f32 to vector<8x128xf32>
    %115 = arith.addf %114, %113 : vector<8x128xf32>
    %116 = arith.divf %114, %115 : vector<8x128xf32>
    %117 = arith.index_cast %94 : i32 to index
    %c0_39 = arith.constant 0 : index
    %118 = vector.load %arg11[%117, %c0_39] : memref<64x128xf32, #tpu.memory_space<vmem>>, vector<8x128xf32>
    tpu.vector_store %arg11[%117, %c0_39], %116 {strides = array<i32>} : memref<64x128xf32, #tpu.memory_space<vmem>>, vector<8x128xf32>,
    %c5_i32 = arith.constant 5 : i32
    %c8_i32_40 = arith.constant 8 : i32
    %119 = arith.muli %c5_i32, %c8_i32_40 : i32
    %120 = tpu.assume_multiple %119, 8 : i32
    %121 = arith.index_cast %120 : i32 to index
    %c0_41 = arith.constant 0 : index
    %122 = vector.load %arg10[%121, %c0_41] : memref<64x384xf32, #tpu.memory_space<vmem>>, vector<8x384xf32>
    %123 = math.tanh %116 : vector<8x128xf32>
    %c0_42 = arith.constant 0 : index
    %c0_43 = arith.constant 0 : index
    %124 = vector.load %arg5[%c0_42, %c0_43] : memref<128x256xf32, #tpu.memory_space<vmem>>, vector<128x256xf32>
    %cst_44 = arith.constant dense<0.000000e+00> : vector<8x256xf32>
    %125 = tpu.matmul %123, %124, %cst_44 {dimension_numbers = #tpu.dot_dimension_numbers<[1], [0], [0], [1], [0, 0, 1, 1], [], []>} : vector<8x128xf32>, vector<128x256xf32>, vector<8x256xf32> -> vector<8x256xf32>
    %126 = vector.extract_strided_slice %122 {offsets = [0, 0], sizes = [8, 128], strides = [1, 1]} : vector<8x384xf32> to vector<8x128xf32>
    %127 = vector.extract_strided_slice %125 {offsets = [0, 0], sizes = [8, 128], strides = [1, 1]} : vector<8x256xf32> to vector<8x128xf32>
    %128 = arith.addf %126, %127 : vector<8x128xf32>
    %129 = math.tanh %128 : vector<8x128xf32>
    %130 = vector.extract_strided_slice %122 {offsets = [0, 128], sizes = [8, 128], strides = [1, 1]} : vector<8x384xf32> to vector<8x128xf32>
    %131 = vector.extract_strided_slice %125 {offsets = [0, 128], sizes = [8, 128], strides = [1, 1]} : vector<8x256xf32> to vector<8x128xf32>
    %132 = arith.addf %130, %131 : vector<8x128xf32>
    %133 = math.tanh %132 : vector<8x128xf32>
    %134 = arith.addf %129, %133 : vector<8x128xf32>
    %135 = arith.mulf %134, %116 : vector<8x128xf32>
    %136 = vector.extract_strided_slice %122 {offsets = [0, 256], sizes = [8, 128], strides = [1, 1]} : vector<8x384xf32> to vector<8x128xf32>
    %137 = arith.addf %135, %136 : vector<8x128xf32>
    %138 = arith.negf %137 : vector<8x128xf32>
    %139 = math.exp %138 : vector<8x128xf32>
    %cst_45 = arith.constant 1.000000e+00 : f32
    %140 = vector.broadcast %cst_45 : f32 to vector<8x128xf32>
    %141 = arith.addf %140, %139 : vector<8x128xf32>
    %142 = arith.divf %140, %141 : vector<8x128xf32>
    %143 = arith.index_cast %120 : i32 to index
    %c0_46 = arith.constant 0 : index
    %144 = vector.load %arg11[%143, %c0_46] : memref<64x128xf32, #tpu.memory_space<vmem>>, vector<8x128xf32>
    tpu.vector_store %arg11[%143, %c0_46], %142 {strides = array<i32>} : memref<64x128xf32, #tpu.memory_space<vmem>>, vector<8x128xf32>,
    %c6_i32 = arith.constant 6 : i32
    %c8_i32_47 = arith.constant 8 : i32
    %145 = arith.muli %c6_i32, %c8_i32_47 : i32
    %146 = tpu.assume_multiple %145, 8 : i32
    %147 = arith.index_cast %146 : i32 to index
    %c0_48 = arith.constant 0 : index
    %148 = vector.load %arg10[%147, %c0_48] : memref<64x384xf32, #tpu.memory_space<vmem>>, vector<8x384xf32>
    %149 = math.tanh %142 : vector<8x128xf32>
    %c0_49 = arith.constant 0 : index
    %c0_50 = arith.constant 0 : index
    %150 = vector.load %arg5[%c0_49, %c0_50] : memref<128x256xf32, #tpu.memory_space<vmem>>, vector<128x256xf32>
    %cst_51 = arith.constant dense<0.000000e+00> : vector<8x256xf32>
    %151 = tpu.matmul %149, %150, %cst_51 {dimension_numbers = #tpu.dot_dimension_numbers<[1], [0], [0], [1], [0, 0, 1, 1], [], []>} : vector<8x128xf32>, vector<128x256xf32>, vector<8x256xf32> -> vector<8x256xf32>
    %152 = vector.extract_strided_slice %148 {offsets = [0, 0], sizes = [8, 128], strides = [1, 1]} : vector<8x384xf32> to vector<8x128xf32>
    %153 = vector.extract_strided_slice %151 {offsets = [0, 0], sizes = [8, 128], strides = [1, 1]} : vector<8x256xf32> to vector<8x128xf32>
    %154 = arith.addf %152, %153 : vector<8x128xf32>
    %155 = math.tanh %154 : vector<8x128xf32>
    %156 = vector.extract_strided_slice %148 {offsets = [0, 128], sizes = [8, 128], strides = [1, 1]} : vector<8x384xf32> to vector<8x128xf32>
    %157 = vector.extract_strided_slice %151 {offsets = [0, 128], sizes = [8, 128], strides = [1, 1]} : vector<8x256xf32> to vector<8x128xf32>
    %158 = arith.addf %156, %157 : vector<8x128xf32>
    %159 = math.tanh %158 : vector<8x128xf32>
    %160 = arith.addf %155, %159 : vector<8x128xf32>
    %161 = arith.mulf %160, %142 : vector<8x128xf32>
    %162 = vector.extract_strided_slice %148 {offsets = [0, 256], sizes = [8, 128], strides = [1, 1]} : vector<8x384xf32> to vector<8x128xf32>
    %163 = arith.addf %161, %162 : vector<8x128xf32>
    %164 = arith.negf %163 : vector<8x128xf32>
    %165 = math.exp %164 : vector<8x128xf32>
    %cst_52 = arith.constant 1.000000e+00 : f32
    %166 = vector.broadcast %cst_52 : f32 to vector<8x128xf32>
    %167 = arith.addf %166, %165 : vector<8x128xf32>
    %168 = arith.divf %166, %167 : vector<8x128xf32>
    %169 = arith.index_cast %146 : i32 to index
    %c0_53 = arith.constant 0 : index
    %170 = vector.load %arg11[%169, %c0_53] : memref<64x128xf32, #tpu.memory_space<vmem>>, vector<8x128xf32>
    tpu.vector_store %arg11[%169, %c0_53], %168 {strides = array<i32>} : memref<64x128xf32, #tpu.memory_space<vmem>>, vector<8x128xf32>,
    %c7_i32 = arith.constant 7 : i32
    %c8_i32_54 = arith.constant 8 : i32
    %171 = arith.muli %c7_i32, %c8_i32_54 : i32
    %172 = tpu.assume_multiple %171, 8 : i32
    %173 = arith.index_cast %172 : i32 to index
    %c0_55 = arith.constant 0 : index
    %174 = vector.load %arg10[%173, %c0_55] : memref<64x384xf32, #tpu.memory_space<vmem>>, vector<8x384xf32>
    %175 = math.tanh %168 : vector<8x128xf32>
    %c0_56 = arith.constant 0 : index
    %c0_57 = arith.constant 0 : index
    %176 = vector.load %arg5[%c0_56, %c0_57] : memref<128x256xf32, #tpu.memory_space<vmem>>, vector<128x256xf32>
    %cst_58 = arith.constant dense<0.000000e+00> : vector<8x256xf32>
    %177 = tpu.matmul %175, %176, %cst_58 {dimension_numbers = #tpu.dot_dimension_numbers<[1], [0], [0], [1], [0, 0, 1, 1], [], []>} : vector<8x128xf32>, vector<128x256xf32>, vector<8x256xf32> -> vector<8x256xf32>
    %178 = vector.extract_strided_slice %174 {offsets = [0, 0], sizes = [8, 128], strides = [1, 1]} : vector<8x384xf32> to vector<8x128xf32>
    %179 = vector.extract_strided_slice %177 {offsets = [0, 0], sizes = [8, 128], strides = [1, 1]} : vector<8x256xf32> to vector<8x128xf32>
    %180 = arith.addf %178, %179 : vector<8x128xf32>
    %181 = math.tanh %180 : vector<8x128xf32>
    %182 = vector.extract_strided_slice %174 {offsets = [0, 128], sizes = [8, 128], strides = [1, 1]} : vector<8x384xf32> to vector<8x128xf32>
    %183 = vector.extract_strided_slice %177 {offsets = [0, 128], sizes = [8, 128], strides = [1, 1]} : vector<8x256xf32> to vector<8x128xf32>
    %184 = arith.addf %182, %183 : vector<8x128xf32>
    %185 = math.tanh %184 : vector<8x128xf32>
    %186 = arith.addf %181, %185 : vector<8x128xf32>
    %187 = arith.mulf %186, %168 : vector<8x128xf32>
    %188 = vector.extract_strided_slice %174 {offsets = [0, 256], sizes = [8, 128], strides = [1, 1]} : vector<8x384xf32> to vector<8x128xf32>
    %189 = arith.addf %187, %188 : vector<8x128xf32>
    %190 = arith.negf %189 : vector<8x128xf32>
    %191 = math.exp %190 : vector<8x128xf32>
    %cst_59 = arith.constant 1.000000e+00 : f32
    %192 = vector.broadcast %cst_59 : f32 to vector<8x128xf32>
    %193 = arith.addf %192, %191 : vector<8x128xf32>
    %194 = arith.divf %192, %193 : vector<8x128xf32>
    %195 = arith.index_cast %172 : i32 to index
    %c0_60 = arith.constant 0 : index
    %196 = vector.load %arg11[%195, %c0_60] : memref<64x128xf32, #tpu.memory_space<vmem>>, vector<8x128xf32>
    tpu.vector_store %arg11[%195, %c0_60], %194 {strides = array<i32>} : memref<64x128xf32, #tpu.memory_space<vmem>>, vector<8x128xf32>,
    %c7_i32_61 = arith.constant 7 : i32
    %c0_62 = arith.constant 0 : index
    %c0_63 = arith.constant 0 : index
    %197 = vector.load %arg12[%c0_62, %c0_63] : memref<8x128xf32, #tpu.memory_space<vmem>>, vector<8x128xf32>
    tpu.vector_store %arg12[%c0_62, %c0_63], %194 {strides = array<i32>} : memref<8x128xf32, #tpu.memory_space<vmem>>, vector<8x128xf32>,
    %c0_64 = arith.constant 0 : index
    %c0_65 = arith.constant 0 : index
    %198 = vector.load %arg11[%c0_64, %c0_65] : memref<64x128xf32, #tpu.memory_space<vmem>>, vector<64x128xf32>
    %c0_66 = arith.constant 0 : index
    %c0_67 = arith.constant 0 : index
    %199 = vector.load %arg6[%c0_66, %c0_67] : memref<128x128xf32, #tpu.memory_space<vmem>>, vector<128x128xf32>
    %cst_68 = arith.constant dense<0.000000e+00> : vector<64x128xf32>
    %200 = tpu.matmul %198, %199, %cst_68 {dimension_numbers = #tpu.dot_dimension_numbers<[1], [0], [0], [1], [0, 0, 1, 1], [], []>} : vector<64x128xf32>, vector<128x128xf32>, vector<64x128xf32> -> vector<64x128xf32>
    %c0_69 = arith.constant 0 : index
    %c0_70 = arith.constant 0 : index
    %201 = vector.load %arg7[%c0_69, %c0_70] : memref<1x128xf32, #tpu.memory_space<vmem>>, vector<1x128xf32>
    %202 = vector.broadcast %201 : vector<1x128xf32> to vector<64x128xf32>
    %203 = arith.addf %200, %202 : vector<64x128xf32>
    %204 = math.tanh %203 : vector<64x128xf32>
    %c0_71 = arith.constant 0 : index
    %c0_72 = arith.constant 0 : index
    %c0_73 = arith.constant 0 : index
    %c0_74 = arith.constant 0 : index
    %205 = vector.load %arg8[%c0_71, %c0_72, %c0_73, %c0_74] : memref<1x1x64x128xf32, #tpu.memory_space<vmem>>, vector<1x1x64x128xf32>
    %206 = vector.shape_cast %205 : vector<1x1x64x128xf32> to vector<64x128xf32>
    %207 = vector.shape_cast %204 : vector<64x128xf32> to vector<1x1x64x128xf32>
    tpu.vector_store %arg8[%c0_71, %c0_72, %c0_73, %c0_74], %207 {strides = array<i32>} : memref<1x1x64x128xf32, #tpu.memory_space<vmem>>, vector<1x1x64x128xf32>,
    %c0_i32 = arith.constant 0 : i32
    %208 = arith.cmpi eq, %arg1, %c0_i32 : i32
    %209 = arith.extui %208 : i1 to i32
    %c0_i32_75 = arith.constant 0 : i32
    %210 = arith.cmpi ne, %209, %c0_i32_75 : i32
    scf.if %210 {
      %c0_76 = arith.constant 0 : index
      %c0_77 = arith.constant 0 : index
      %211 = vector.load %arg12[%c0_76, %c0_77] : memref<8x128xf32, #tpu.memory_space<vmem>>, vector<8x128xf32>
      %c0_78 = arith.constant 0 : index
      %c0_79 = arith.constant 0 : index
      %c0_80 = arith.constant 0 : index
      %212 = vector.load %arg9[%c0_78, %c0_79, %c0_80] : memref<1x8x128xf32, #tpu.memory_space<vmem>>, vector<1x8x128xf32>
      %213 = vector.shape_cast %212 : vector<1x8x128xf32> to vector<8x128xf32>
      %214 = vector.shape_cast %211 : vector<8x128xf32> to vector<1x8x128xf32>
      tpu.vector_store %arg9[%c0_78, %c0_79, %c0_80], %214 {strides = array<i32>} : memref<1x8x128xf32, #tpu.memory_space<vmem>>, vector<1x8x128xf32>,
    } else {
    }
    return
  }
  func.func @transform_0(%arg0: i32, %arg1: i32) -> (i32, i32, i32, i32) {
    %c0_i32 = arith.constant 0 : i32
    %c0_i32_0 = arith.constant 0 : i32
    %c0_i32_1 = arith.constant 0 : i32
    return %arg0, %arg1, %c0_i32, %c0_i32_0 : i32, i32, i32, i32
  }
  func.func @transform_1(%arg0: i32, %arg1: i32) -> (i32, i32) {
    %c0_i32 = arith.constant 0 : i32
    %c0_i32_0 = arith.constant 0 : i32
    %c0_i32_1 = arith.constant 0 : i32
    return %c0_i32, %c0_i32_0 : i32, i32
  }
  func.func @transform_2(%arg0: i32, %arg1: i32) -> (i32, i32) {
    %c0_i32 = arith.constant 0 : i32
    %c0_i32_0 = arith.constant 0 : i32
    %c0_i32_1 = arith.constant 0 : i32
    return %c0_i32, %c0_i32_0 : i32, i32
  }
  func.func @transform_3(%arg0: i32, %arg1: i32) -> (i32, i32) {
    %c0_i32 = arith.constant 0 : i32
    %c0_i32_0 = arith.constant 0 : i32
    %c0_i32_1 = arith.constant 0 : i32
    return %c0_i32, %c0_i32_0 : i32, i32
  }
  func.func @transform_4(%arg0: i32, %arg1: i32) -> (i32, i32) {
    %c0_i32 = arith.constant 0 : i32
    %c0_i32_0 = arith.constant 0 : i32
    %c0_i32_1 = arith.constant 0 : i32
    return %c0_i32, %c0_i32_0 : i32, i32
  }
  func.func @transform_5(%arg0: i32, %arg1: i32) -> (i32, i32) {
    %c0_i32 = arith.constant 0 : i32
    %c0_i32_0 = arith.constant 0 : i32
    %c0_i32_1 = arith.constant 0 : i32
    return %c0_i32, %c0_i32_0 : i32, i32
  }
  func.func @transform_6(%arg0: i32, %arg1: i32) -> (i32, i32, i32, i32) {
    %c0_i32 = arith.constant 0 : i32
    %c0_i32_0 = arith.constant 0 : i32
    %c0_i32_1 = arith.constant 0 : i32
    return %arg0, %arg1, %c0_i32, %c0_i32_0 : i32, i32, i32, i32
  }
  func.func @transform_7(%arg0: i32, %arg1: i32) -> (i32, i32, i32) {
    %c0_i32 = arith.constant 0 : i32
    %c0_i32_0 = arith.constant 0 : i32
    %c0_i32_1 = arith.constant 0 : i32
    return %arg0, %c0_i32, %c0_i32_0 : i32, i32, i32
  }
}

</mosaic_0001>

<llo_original>
// kernel: tpu_custom_call.1
$region0: #{tpu_custom_call.1}
  #allocation0 [shape = 'u32[]', space=smem, size = 0x4, offset = 0x4, fixed_abs, tag = 'smem constant byte address 0x4 - core index']
  #allocation1 [shape = 'u32[144,128]{1,0:T(1,128)}', space=vmem, size = 0x12000, scoped, tag = 'internal scratch']
  #allocation2 [shape = 'f32[64,384]{1,0:T(8,128)}', space=vmem, size = 0x18000, scoped, tag = 'scratch operand']
  #allocation3 [shape = 'f32[64,128]{1,0:T(8,128)}', space=vmem, size = 0x8000, scoped, tag = 'scratch operand']
  #allocation4 [shape = 'f32[8,128]{1,0:T(8,128)}', space=vmem, size = 0x1000, scoped, tag = 'scratch operand']
  %s0 = inlined_call_operand.vmem [shape: f32[1,1,64,8], index: 0, kind: input, shape index: {}]
  %s1 = inlined_call_operand.vmem [shape: f32[8,384], index: 1, kind: input, shape index: {}]
  %s2 = inlined_call_operand.vmem [shape: f32[1,384], index: 2, kind: input, shape index: {}]
  %s3 = inlined_call_operand.hbm [shape: f32[128,256], index: 3, kind: input, shape index: {}]
  %s4 = inlined_call_operand.hbm [shape: f32[128,128], index: 4, kind: input, shape index: {}]
  %s5 = inlined_call_operand.vmem [shape: f32[1,128], index: 5, kind: input, shape index: {}]
  %s6 = inlined_call_operand.hbm [shape: f32[1,1,64,128], index: 6, kind: output, shape index: {0}]
  %s7 = inlined_call_operand.hbm [shape: f32[1,8,128], index: 7, kind: output, shape index: {1}]
  %8 = xla_tuple %s6, %s7
  %s9 = sld [smem:[#allocation0]]
  $region54: #{tpu_custom_call.1} parent=0
    _
  %s11 = ssub.s32 1, %s9
  %s12 = scalar_select 0, %s11, %s9
  $region1: #{tpu_custom_call.1} parent=0
    #allocation5 [shape = 'u8[131072]{0}', space=vmem, size = 0x20000, scoped, tag = 'input window, operand 3, single buffered']
    #allocation6 [shape = 's32[1]{0}', space=sflag, size = 0x4, scoped, tag = 'scoped memory for tpu_custom_call.1']
    #allocation7 [shape = 's32[1]{0}', space=sflag, size = 0x4, scoped, tag = 'scoped memory for tpu_custom_call.1']
    #allocation8 [shape = 'u8[65536]{0}', space=vmem, size = 0x10000, scoped, tag = 'input window, operand 4, single buffered']
    #allocation9 [shape = 's32[1]{0}', space=sflag, size = 0x4, scoped, tag = 'scoped memory for tpu_custom_call.1']
    #allocation10 [shape = 'u8[32768]{0}', space=vmem, size = 0x8000, scoped, tag = 'output window, operand 0, single buffered']
    #allocation11 [shape = 'u8[4096]{0}', space=vmem, size = 0x1000, scoped, tag = 'output window, operand 1, single buffered']
    #allocation12 [shape = 's32[1]{0}', space=sflag, size = 0x4, scoped, tag = 'scoped memory for tpu_custom_call.1']
    %13 = vsyncpa [#allocation6], 0
    %14 = vsyncpa [#allocation9], 0
    %15 = vsyncpa [#allocation7], 0
    %16 = vsyncpa [#allocation12], 0
    // Predicated region
    $region2: #{tpu_custom_call.1} parent=1 // pred_check
      _
    $region3: #{tpu_custom_call.1} parent=1 // pred_check_branch
      %18 = sbr.rel (0) target = $region5
    $region4: #{tpu_custom_call.1} parent=1 // pred_region
      _
    $region5: #{tpu_custom_call.1} parent=1 // pred_fallthru
      _
    // Predicated region
    $region6: #{tpu_custom_call.1} parent=1 // pred_check
      _
    $region7: #{tpu_custom_call.1} parent=1 // pred_check_branch
      %20 = sbr.rel (0) target = $region9
    $region8: #{tpu_custom_call.1} parent=1 // pred_region
      _
    $region9: #{tpu_custom_call.1} parent=1 // pred_fallthru
      _
    // Predicated region
    $region10: #{tpu_custom_call.1} parent=1 // pred_check
      _
    $region11: #{tpu_custom_call.1} parent=1 // pred_check_branch
      %22 = sbr.rel (0) target = $region13
    $region12: #{tpu_custom_call.1} parent=1 // pred_region
      _
    $region13: #{tpu_custom_call.1} parent=1 // pred_fallthru
      _
    // Predicated region
    $region14: #{tpu_custom_call.1} parent=1 // pred_check
      _
    $region15: #{tpu_custom_call.1} parent=1 // pred_check_branch
      %24 = sbr.rel (0) target = $region17
    $region16: #{tpu_custom_call.1} parent=1 // pred_region
      %s26 = ssub.s32 4096, 4096
      %27 = vsyncadd [#allocation6], %s26
      %s28 = sshll.u32 [#allocation5], 4
      %s29 = int_to_ptr.vmem [resolvable:$true] %s28
      %34 = dma.hbm_to_vmem [thread:$0]  %s3, 4096, %s29, [#allocation6], 256, 256, 16
    $region17: #{tpu_custom_call.1} parent=1 // pred_fallthru
      _
    // Predicated region
    $region18: #{tpu_custom_call.1} parent=1 // pred_check
      _
    $region19: #{tpu_custom_call.1} parent=1 // pred_check_branch
      %36 = sbr.rel (0) target = $region21
    $region20: #{tpu_custom_call.1} parent=1 // pred_region
      %s38 = ssub.s32 2048, 2048
      %39 = vsyncadd [#allocation9], %s38
      %s40 = sshll.u32 [#allocation8], 4
      %s41 = int_to_ptr.vmem [resolvable:$true] %s40
      %46 = dma.hbm_to_vmem [thread:$0]  %s4, 2048, %s41, [#allocation9], 128, 128, 8
    $region21: #{tpu_custom_call.1} parent=1 // pred_fallthru
      _
    // Predicated region
    $region22: #{tpu_custom_call.1} parent=1 // pred_check
      _
    $region23: #{tpu_custom_call.1} parent=1 // pred_check_branch
      %48 = sbr.rel (0) target = $region25
    $region24: #{tpu_custom_call.1} parent=1 // pred_region
      _
    $region25: #{tpu_custom_call.1} parent=1 // pred_fallthru
      _
    // Predicated region
    $region26: #{tpu_custom_call.1} parent=1 // pred_check
      _
    $region27: #{tpu_custom_call.1} parent=1 // pred_check_branch
      %50 = sbr.rel (0) target = $region29
    $region28: #{tpu_custom_call.1} parent=1 // pred_region
      %51 = dma.done [#allocation6], 4096
    $region29: #{tpu_custom_call.1} parent=1 // pred_fallthru
      _
    // Predicated region
    $region30: #{tpu_custom_call.1} parent=1 // pred_check
      _
    $region31: #{tpu_custom_call.1} parent=1 // pred_check_branch
      %53 = sbr.rel (0) target = $region33
    $region32: #{tpu_custom_call.1} parent=1 // pred_region
      %54 = dma.done [#allocation9], 2048
    $region33: #{tpu_custom_call.1} parent=1 // pred_fallthru
      _
    %v55 = vld [vmem:[%s0] sm:$0xff]
    %v56 = vld [vmem:[%s0 + $0x8] sm:$0xff]
    %v57 = vld [vmem:[%s0 + $0x10] sm:$0xff]
    %v58 = vld [vmem:[%s0 + $0x18] sm:$0xff]
    %v59 = vld [vmem:[%s0 + $0x20] sm:$0xff]
    %v60 = vld [vmem:[%s0 + $0x28] sm:$0xff]
    %v61 = vld [vmem:[%s0 + $0x30] sm:$0xff]
    %v62 = vld [vmem:[%s0 + $0x38] sm:$0xff]
    %v63 = vld [vmem:[%s1] sm:$0xff]
    %v64 = vld [vmem:[%s1 + $0x8] sm:$0xff]
    %v65 = vld [vmem:[%s1 + $0x10] sm:$0xff]
    %v66 = vld [vmem:[%s2] sm:$0x7]
    %v68 = vlaneseq
    %v69 = vshrl.u32 %v68, 7
    %v70 = vsub.s32 0, %v69
    %v71 = vrot.slane %v66, %v70
    %v72 = vlaneseq
    %v73 = vshrl.u32 %v72, 7
    %v74 = vsub.s32 1, %v73
    %v75 = vrot.slane %v66, %v74
    %v76 = vlaneseq
    %v77 = vshrl.u32 %v76, 7
    %v78 = vsub.s32 2, %v77
    %v79 = vrot.slane %v66, %v78
    %vm83 = vcmask 64512
    %v85 = vsel %vm83, %v55, 0
    %v88 = vsel %vm83, %v56, 0
    %v91 = vsel %vm83, %v57, 0
    %v94 = vsel %vm83, %v58, 0
    %v97 = vsel %vm83, %v59, 0
    %v100 = vsel %vm83, %v60, 0
    %v103 = vsel %vm83, %v61, 0
    %v106 = vsel %vm83, %v62, 0
    %108 = vmatprep.subr.mxu0 0.0
    %109 = vmatpush1.msra.mxu0 0.0
    %110 = vmatprep.subr.mxu0 0.0
    %111 = vmatpush1.msra.mxu0 0.0
    %112 = vmatprep.subr.mxu0 0.0
    %113 = vmatpush1.msra.mxu0 0.0
    %114 = vmatprep.subr.mxu0 0.0
    %115 = vmatpush1.msra.mxu0 0.0
    %116 = vmatprep.subr.mxu0 0.0
    %117 = vmatpush1.msra.mxu0 0.0
    %118 = vmatprep.subr.mxu0 0.0
    %119 = vmatpush1.msra.mxu0 0.0
    %120 = vmatprep.subr.mxu0 0.0
    %121 = vmatpush1.msra.mxu0 0.0
    %122 = vmatprep.subr.mxu0 0.0
    %123 = vmatpush1.msra.mxu0 0.0
    %124 = vmatprep.subr.mxu0 0.0
    %125 = vmatpush1.msra.mxu0 0.0
    %126 = vmatprep.subr.mxu0 0.0
    %127 = vmatpush1.msra.mxu0 0.0
    %128 = vmatprep.subr.mxu0 0.0
    %129 = vmatpush1.msra.mxu0 0.0
    %130 = vmatprep.subr.mxu0 0.0
    %131 = vmatpush1.msra.mxu0 0.0
    %132 = vmatprep.subr.mxu0 0.0
    %133 = vmatpush1.msra.mxu0 0.0
    %134 = vmatprep.subr.mxu0 0.0
    %135 = vmatpush1.msra.mxu0 0.0
    %136 = vmatprep.subr.mxu0 0.0
    %137 = vmatpush1.msra.mxu0 0.0
    %138 = vmatprep.subr.mxu0 %v64
    %139 = vmatpush1.msra.mxu0 %v63
    %140 = vmatprep.subr.mxu0 0.0
    %141 = vmatpush2.msra.mxu0 0.0
    %142 = vmatprep.subr.mxu0 0.0
    %143 = vmatpush2.msra.mxu0 0.0
    %144 = vmatprep.subr.mxu0 0.0
    %145 = vmatpush2.msra.mxu0 0.0
    %146 = vmatprep.subr.mxu0 0.0
    %147 = vmatpush2.msra.mxu0 0.0
    %148 = vmatprep.subr.mxu0 0.0
    %149 = vmatpush2.msra.mxu0 0.0
    %150 = vmatprep.subr.mxu0 0.0
    %151 = vmatpush2.msra.mxu0 0.0
    %152 = vmatprep.subr.mxu0 0.0
    %153 = vmatpush2.msra.mxu0 0.0
    %154 = vmatprep.subr.mxu0 0.0
    %155 = vmatpush2.msra.mxu0 0.0
    %156 = vmatprep.subr.mxu0 0.0
    %157 = vmatpush2.msra.mxu0 0.0
    %158 = vmatprep.subr.mxu0 0.0
    %159 = vmatpush2.msra.mxu0 0.0
    %160 = vmatprep.subr.mxu0 0.0
    %161 = vmatpush2.msra.mxu0 0.0
    %162 = vmatprep.subr.mxu0 0.0
    %163 = vmatpush2.msra.mxu0 0.0
    %164 = vmatprep.subr.mxu0 0.0
    %165 = vmatpush2.msra.mxu0 0.0
    %166 = vmatprep.subr.mxu0 0.0
    %167 = vmatpush2.msra.mxu0 0.0
    %168 = vmatprep.subr.mxu0 0.0
    %169 = vmatpush2.msra.mxu0 0.0
    %170 = vmatprep.subr.mxu0 0.0
    %171 = vmatpush2.msra.mxu0 0.0
    %172 = vmatprep.mubr.f32.mxu0 0.0
    %173 = vmatmul.mubr.f32.gmra.mxu0 %v85
    %v174 = vpop.f32.mrf.mxu0
    %v175 = vadd.f32 %v71, %v174
    %v176 = vpop.f32.mrf.mxu0
    %v177 = vadd.f32 %v75, %v176
    %178 = vmatprep.mubr.f32.mxu0 0.0
    %179 = vmatmul.mubr.f32.gmra.mxu0 %v88
    %v180 = vpop.f32.mrf.mxu0
    %v181 = vadd.f32 %v71, %v180
    %v182 = vpop.f32.mrf.mxu0
    %v183 = vadd.f32 %v75, %v182
    %184 = vmatprep.mubr.f32.mxu0 0.0
    %185 = vmatmul.mubr.f32.gmra.mxu0 %v91
    %v186 = vpop.f32.mrf.mxu0
    %v187 = vadd.f32 %v71, %v186
    %v188 = vpop.f32.mrf.mxu0
    %v189 = vadd.f32 %v75, %v188
    %190 = vmatprep.mubr.f32.mxu0 0.0
    %191 = vmatmul.mubr.f32.gmra.mxu0 %v94
    %v192 = vpop.f32.mrf.mxu0
    %v193 = vadd.f32 %v71, %v192
    %v194 = vpop.f32.mrf.mxu0
    %v195 = vadd.f32 %v75, %v194
    %196 = vmatprep.mubr.f32.mxu0 0.0
    %197 = vmatmul.mubr.f32.gmra.mxu0 %v97
    %v198 = vpop.f32.mrf.mxu0
    %v199 = vadd.f32 %v71, %v198
    %v200 = vpop.f32.mrf.mxu0
    %v201 = vadd.f32 %v75, %v200
    %202 = vmatprep.mubr.f32.mxu0 0.0
    %203 = vmatmul.mubr.f32.gmra.mxu0 %v100
    %v204 = vpop.f32.mrf.mxu0
    %v205 = vadd.f32 %v71, %v204
    %v206 = vpop.f32.mrf.mxu0
    %v207 = vadd.f32 %v75, %v206
    %208 = vmatprep.mubr.f32.mxu0 0.0
    %209 = vmatmul.mubr.f32.gmra.mxu0 %v103
    %v210 = vpop.f32.mrf.mxu0
    %v211 = vadd.f32 %v71, %v210
    %v212 = vpop.f32.mrf.mxu0
    %v213 = vadd.f32 %v75, %v212
    %214 = vmatprep.mubr.f32.mxu0 0.0
    %215 = vmatmul.mubr.f32.gmra.mxu0 %v106
    %v216 = vpop.f32.mrf.mxu0
    %v217 = vadd.f32 %v71, %v216
    %v218 = vpop.f32.mrf.mxu0
    %v219 = vadd.f32 %v75, %v218
    %220 = vdwg.mxu0
    %221 = vmatprep.subr.mxu0 0.0
    %222 = vmatpush1.msra.mxu0 0.0
    %223 = vmatprep.subr.mxu0 0.0
    %224 = vmatpush1.msra.mxu0 0.0
    %225 = vmatprep.subr.mxu0 0.0
    %226 = vmatpush1.msra.mxu0 0.0
    %227 = vmatprep.subr.mxu0 0.0
    %228 = vmatpush1.msra.mxu0 0.0
    %229 = vmatprep.subr.mxu0 0.0
    %230 = vmatpush1.msra.mxu0 0.0
    %231 = vmatprep.subr.mxu0 0.0
    %232 = vmatpush1.msra.mxu0 0.0
    %233 = vmatprep.subr.mxu0 0.0
    %234 = vmatpush1.msra.mxu0 0.0
    %235 = vmatprep.subr.mxu0 0.0
    %236 = vmatpush1.msra.mxu0 0.0
    %237 = vmatprep.subr.mxu0 0.0
    %238 = vmatpush1.msra.mxu0 0.0
    %239 = vmatprep.subr.mxu0 0.0
    %240 = vmatpush1.msra.mxu0 0.0
    %241 = vmatprep.subr.mxu0 0.0
    %242 = vmatpush1.msra.mxu0 0.0
    %243 = vmatprep.subr.mxu0 0.0
    %244 = vmatpush1.msra.mxu0 0.0
    %245 = vmatprep.subr.mxu0 0.0
    %246 = vmatpush1.msra.mxu0 0.0
    %247 = vmatprep.subr.mxu0 0.0
    %248 = vmatpush1.msra.mxu0 0.0
    %249 = vmatprep.subr.mxu0 0.0
    %250 = vmatpush1.msra.mxu0 0.0
    %251 = vmatprep.subr.mxu0 0.0
    %252 = vmatpush1.msra.mxu0 %v65
    %253 = vmatprep.subr.mxu0 0.0
    %254 = vmatpush2.msra.mxu0 0.0
    %255 = vmatprep.subr.mxu0 0.0
    %256 = vmatpush2.msra.mxu0 0.0
    %257 = vmatprep.subr.mxu0 0.0
    %258 = vmatpush2.msra.mxu0 0.0
    %259 = vmatprep.subr.mxu0 0.0
    %260 = vmatpush2.msra.mxu0 0.0
    %261 = vmatprep.subr.mxu0 0.0
    %262 = vmatpush2.msra.mxu0 0.0
    %263 = vmatprep.subr.mxu0 0.0
    %264 = vmatpush2.msra.mxu0 0.0
    %265 = vmatprep.subr.mxu0 0.0
    %266 = vmatpush2.msra.mxu0 0.0
    %267 = vmatprep.subr.mxu0 0.0
    %268 = vmatpush2.msra.mxu0 0.0
    %269 = vmatprep.subr.mxu0 0.0
    %270 = vmatpush2.msra.mxu0 0.0
    %271 = vmatprep.subr.mxu0 0.0
    %272 = vmatpush2.msra.mxu0 0.0
    %273 = vmatprep.subr.mxu0 0.0
    %274 = vmatpush2.msra.mxu0 0.0
    %275 = vmatprep.subr.mxu0 0.0
    %276 = vmatpush2.msra.mxu0 0.0
    %277 = vmatprep.subr.mxu0 0.0
    %278 = vmatpush2.msra.mxu0 0.0
    %279 = vmatprep.subr.mxu0 0.0
    %280 = vmatpush2.msra.mxu0 0.0
    %281 = vmatprep.subr.mxu0 0.0
    %282 = vmatpush2.msra.mxu0 0.0
    %283 = vmatprep.subr.mxu0 0.0
    %284 = vmatpush2.msra.mxu0 0.0
    %285 = vmatprep.mubr.f32.mxu0 0.0
    %286 = vmatmul.mubr.f32.gmra.mxu0 %v85
    %v287 = vpop.f32.mrf.mxu0
    %v288 = vadd.f32 %v79, %v287
    %v289 = vpop.f32.mrf.mxu0
    %290 = vmatprep.mubr.f32.mxu0 0.0
    %291 = vmatmul.mubr.f32.gmra.mxu0 %v88
    %v292 = vpop.f32.mrf.mxu0
    %v293 = vadd.f32 %v79, %v292
    %v294 = vpop.f32.mrf.mxu0
    %295 = vmatprep.mubr.f32.mxu0 0.0
    %296 = vmatmul.mubr.f32.gmra.mxu0 %v91
    %v297 = vpop.f32.mrf.mxu0
    %v298 = vadd.f32 %v79, %v297
    %v299 = vpop.f32.mrf.mxu0
    %300 = vmatprep.mubr.f32.mxu0 0.0
    %301 = vmatmul.mubr.f32.gmra.mxu0 %v94
    %v302 = vpop.f32.mrf.mxu0
    %v303 = vadd.f32 %v79, %v302
    %v304 = vpop.f32.mrf.mxu0
    %305 = vmatprep.mubr.f32.mxu0 0.0
    %306 = vmatmul.mubr.f32.gmra.mxu0 %v97
    %v307 = vpop.f32.mrf.mxu0
    %v308 = vadd.f32 %v79, %v307
    %v309 = vpop.f32.mrf.mxu0
    %310 = vmatprep.mubr.f32.mxu0 0.0
    %311 = vmatmul.mubr.f32.gmra.mxu0 %v100
    %v312 = vpop.f32.mrf.mxu0
    %v313 = vadd.f32 %v79, %v312
    %v314 = vpop.f32.mrf.mxu0
    %315 = vmatprep.mubr.f32.mxu0 0.0
    %316 = vmatmul.mubr.f32.gmra.mxu0 %v103
    %v317 = vpop.f32.mrf.mxu0
    %v318 = vadd.f32 %v79, %v317
    %v319 = vpop.f32.mrf.mxu0
    %320 = vmatprep.mubr.f32.mxu0 0.0
    %321 = vmatmul.mubr.f32.gmra.mxu0 %v106
    %v322 = vpop.f32.mrf.mxu0
    %v323 = vadd.f32 %v79, %v322
    %v324 = vpop.f32.mrf.mxu0
    %325 = vdwg.mxu0
    %326 = vst [vmem:[#allocation2] sm:$0xff] %v175
    %327 = vst [vmem:[#allocation2 + $0x8] sm:$0xff] %v177
    %328 = vst [vmem:[#allocation2 + $0x10] sm:$0xff] %v288
    %329 = vst [vmem:[#allocation2 + $0x18] sm:$0xff] %v181
    %330 = vst [vmem:[#allocation2 + $0x20] sm:$0xff] %v183
    %331 = vst [vmem:[#allocation2 + $0x28] sm:$0xff] %v293
    %332 = vst [vmem:[#allocation2 + $0x30] sm:$0xff] %v187
    %333 = vst [vmem:[#allocation2 + $0x38] sm:$0xff] %v189
    %334 = vst [vmem:[#allocation2 + $0x40] sm:$0xff] %v298
    %335 = vst [vmem:[#allocation2 + $0x48] sm:$0xff] %v193
    %336 = vst [vmem:[#allocation2 + $0x50] sm:$0xff] %v195
    %337 = vst [vmem:[#allocation2 + $0x58] sm:$0xff] %v303
    %338 = vst [vmem:[#allocation2 + $0x60] sm:$0xff] %v199
    %339 = vst [vmem:[#allocation2 + $0x68] sm:$0xff] %v201
    %340 = vst [vmem:[#allocation2 + $0x70] sm:$0xff] %v308
    %341 = vst [vmem:[#allocation2 + $0x78] sm:$0xff] %v205
    %342 = vst [vmem:[#allocation2 + $0x80] sm:$0xff] %v207
    %343 = vst [vmem:[#allocation2 + $0x88] sm:$0xff] %v313
    %344 = vst [vmem:[#allocation2 + $0x90] sm:$0xff] %v211
    %345 = vst [vmem:[#allocation2 + $0x98] sm:$0xff] %v213
    %346 = vst [vmem:[#allocation2 + $0xa0] sm:$0xff] %v318
    %347 = vst [vmem:[#allocation2 + $0xa8] sm:$0xff] %v217
    %348 = vst [vmem:[#allocation2 + $0xb0] sm:$0xff] %v219
    %349 = vst [vmem:[#allocation2 + $0xb8] sm:$0xff] %v323
    %v350 = vld [vmem:[#allocation2 + $0x10] sm:$0xff]
    %v351 = vxor.u32 %v350, 2147483648
    %v352 = vmul.f32 %v351, 1.442695
    %v353 = vpow.pop %v352
    %v354 = vadd.f32 %v353, 1.0
    %v355 = vrcp.pop %v354
    %v356 = vmul.f32 1.0, %v355
    %357 = vst [vmem:[#allocation3] sm:$0xff] %v356
    %s358 = smul.u32 1, 3
    %s359 = smul.addr %s358, 8
    %s360 = scalar_lea.vmem [#allocation2], %s359
    %v361 = vld [vmem:[%s360] sm:$0xff]
    %v362 = vld [vmem:[%s360 + $0x8] sm:$0xff]
    %v363 = vld [vmem:[%s360 + $0x10] sm:$0xff]
    %v364 = vtanh.pop %v356
    %v365 = vld [vmem:[#allocation5] sm:$0xff]
    %v366 = vld [vmem:[#allocation5 + $0x8] sm:$0xff]
    %v367 = vld [vmem:[#allocation5 + $0x10] sm:$0xff]
    %v368 = vld [vmem:[#allocation5 + $0x18] sm:$0xff]
    %v369 = vld [vmem:[#allocation5 + $0x20] sm:$0xff]
    %v370 = vld [vmem:[#allocation5 + $0x28] sm:$0xff]
    %v371 = vld [vmem:[#allocation5 + $0x30] sm:$0xff]
    %v372 = vld [vmem:[#allocation5 + $0x38] sm:$0xff]
    %v373 = vld [vmem:[#allocation5 + $0x40] sm:$0xff]
    %v374 = vld [vmem:[#allocation5 + $0x48] sm:$0xff]
    %v375 = vld [vmem:[#allocation5 + $0x50] sm:$0xff]
    %v376 = vld [vmem:[#allocation5 + $0x58] sm:$0xff]
    %v377 = vld [vmem:[#allocation5 + $0x60] sm:$0xff]
    %v378 = vld [vmem:[#allocation5 + $0x68] sm:$0xff]
    %v379 = vld [vmem:[#allocation5 + $0x70] sm:$0xff]
    %v380 = vld [vmem:[#allocation5 + $0x78] sm:$0xff]
    %v381 = vld [vmem:[#allocation5 + $0x80] sm:$0xff]
    %v382 = vld [vmem:[#allocation5 + $0x88] sm:$0xff]
    %v383 = vld [vmem:[#allocation5 + $0x90] sm:$0xff]
    %v384 = vld [vmem:[#allocation5 + $0x98] sm:$0xff]
    %v385 = vld [vmem:[#allocation5 + $0xa0] sm:$0xff]
    %v386 = vld [vmem:[#allocation5 + $0xa8] sm:$0xff]
    %v387 = vld [vmem:[#allocation5 + $0xb0] sm:$0xff]
    %v388 = vld [vmem:[#allocation5 + $0xb8] sm:$0xff]
    %v389 = vld [vmem:[#allocation5 + $0xc0] sm:$0xff]
    %v390 = vld [vmem:[#allocation5 + $0xc8] sm:$0xff]
    %v391 = vld [vmem:[#allocation5 + $0xd0] sm:$0xff]
    %v392 = vld [vmem:[#allocation5 + $0xd8] sm:$0xff]
    %v393 = vld [vmem:[#allocation5 + $0xe0] sm:$0xff]
    %v394 = vld [vmem:[#allocation5 + $0xe8] sm:$0xff]
    %v395 = vld [vmem:[#allocation5 + $0xf0] sm:$0xff]
    %v396 = vld [vmem:[#allocation5 + $0xf8] sm:$0xff]
    %397 = vmatprep.subr.mxu0 %v396
    %398 = vmatpush1.msra.mxu0 %v395
    %399 = vmatprep.subr.mxu0 %v394
    %400 = vmatpush1.msra.mxu0 %v393
    %401 = vmatprep.subr.mxu0 %v392
    %402 = vmatpush1.msra.mxu0 %v391
    %403 = vmatprep.subr.mxu0 %v390
    %404 = vmatpush1.msra.mxu0 %v389
    %405 = vmatprep.subr.mxu0 %v388
    %406 = vmatpush1.msra.mxu0 %v387
    %407 = vmatprep.subr.mxu0 %v386
    %408 = vmatpush1.msra.mxu0 %v385
    %409 = vmatprep.subr.mxu0 %v384
    %410 = vmatpush1.msra.mxu0 %v383
    %411 = vmatprep.subr.mxu0 %v382
    %412 = vmatpush1.msra.mxu0 %v381
    %413 = vmatprep.subr.mxu0 %v380
    %414 = vmatpush1.msra.mxu0 %v379
    %415 = vmatprep.subr.mxu0 %v378
    %416 = vmatpush1.msra.mxu0 %v377
    %417 = vmatprep.subr.mxu0 %v376
    %418 = vmatpush1.msra.mxu0 %v375
    %419 = vmatprep.subr.mxu0 %v374
    %420 = vmatpush1.msra.mxu0 %v373
    %421 = vmatprep.subr.mxu0 %v372
    %422 = vmatpush1.msra.mxu0 %v371
    %423 = vmatprep.subr.mxu0 %v370
    %424 = vmatpush1.msra.mxu0 %v369
    %425 = vmatprep.subr.mxu0 %v368
    %426 = vmatpush1.msra.mxu0 %v367
    %427 = vmatprep.subr.mxu0 %v366
    %428 = vmatpush1.msra.mxu0 %v365
    %429 = vmatprep.subr.mxu0 0.0
    %430 = vmatpush2.msra.mxu0 0.0
    %431 = vmatprep.subr.mxu0 0.0
    %432 = vmatpush2.msra.mxu0 0.0
    %433 = vmatprep.subr.mxu0 0.0
    %434 = vmatpush2.msra.mxu0 0.0
    %435 = vmatprep.subr.mxu0 0.0
    %436 = vmatpush2.msra.mxu0 0.0
    %437 = vmatprep.subr.mxu0 0.0
    %438 = vmatpush2.msra.mxu0 0.0
    %439 = vmatprep.subr.mxu0 0.0
    %440 = vmatpush2.msra.mxu0 0.0
    %441 = vmatprep.subr.mxu0 0.0
    %442 = vmatpush2.msra.mxu0 0.0
    %443 = vmatprep.subr.mxu0 0.0
    %444 = vmatpush2.msra.mxu0 0.0
    %445 = vmatprep.subr.mxu0 0.0
    %446 = vmatpush2.msra.mxu0 0.0
    %447 = vmatprep.subr.mxu0 0.0
    %448 = vmatpush2.msra.mxu0 0.0
    %449 = vmatprep.subr.mxu0 0.0
    %450 = vmatpush2.msra.mxu0 0.0
    %451 = vmatprep.subr.mxu0 0.0
    %452 = vmatpush2.msra.mxu0 0.0
    %453 = vmatprep.subr.mxu0 0.0
    %454 = vmatpush2.msra.mxu0 0.0
    %455 = vmatprep.subr.mxu0 0.0
    %456 = vmatpush2.msra.mxu0 0.0
    %457 = vmatprep.subr.mxu0 0.0
    %458 = vmatpush2.msra.mxu0 0.0
    %459 = vmatprep.subr.mxu0 0.0
    %460 = vmatpush2.msra.mxu0 0.0
    %461 = vmatprep.mubr.f32.mxu0 0.0
    %462 = vmatmul.mubr.f32.gmra.mxu0 %v364
    %v463 = vpop.f32.mrf.mxu0
    %v464 = vadd.f32 0.0, %v463
    %v465 = vpop.f32.mrf.mxu0
    %v466 = vadd.f32 0.0, %v465
    %467 = vdwg.mxu0
    %v468 = vadd.f32 %v361, %v464
    %v469 = vtanh.pop %v468
    %v470 = vadd.f32 %v362, %v466
    %v471 = vtanh.pop %v470
    %v472 = vadd.f32 %v469, %v471
    %v473 = vmul.f32 %v472, %v356
    %v474 = vadd.f32 %v473, %v363
    %v475 = vxor.u32 %v474, 2147483648
    %v476 = vmul.f32 %v475, 1.442695
    %v477 = vpow.pop %v476
    %v478 = vadd.f32 %v477, 1.0
    %v479 = vrcp.pop %v478
    %v480 = vmul.f32 1.0, %v479
    %s481 = scalar_lea.vmem [#allocation3], 8
    %482 = vst [vmem:[%s481] sm:$0xff] %v480
    %s483 = smul.u32 2, 3
    %s484 = smul.addr %s483, 8
    %s485 = scalar_lea.vmem [#allocation2], %s484
    %v486 = vld [vmem:[%s485] sm:$0xff]
    %v487 = vld [vmem:[%s485 + $0x8] sm:$0xff]
    %v488 = vld [vmem:[%s485 + $0x10] sm:$0xff]
    %v489 = vtanh.pop %v480
    %v490 = vld [vmem:[#allocation5] sm:$0xff]
    %v491 = vld [vmem:[#allocation5 + $0x8] sm:$0xff]
    %v492 = vld [vmem:[#allocation5 + $0x10] sm:$0xff]
    %v493 = vld [vmem:[#allocation5 + $0x18] sm:$0xff]
    %v494 = vld [vmem:[#allocation5 + $0x20] sm:$0xff]
    %v495 = vld [vmem:[#allocation5 + $0x28] sm:$0xff]
    %v496 = vld [vmem:[#allocation5 + $0x30] sm:$0xff]
    %v497 = vld [vmem:[#allocation5 + $0x38] sm:$0xff]
    %v498 = vld [vmem:[#allocation5 + $0x40] sm:$0xff]
    %v499 = vld [vmem:[#allocation5 + $0x48] sm:$0xff]
    %v500 = vld [vmem:[#allocation5 + $0x50] sm:$0xff]
    %v501 = vld [vmem:[#allocation5 + $0x58] sm:$0xff]
    %v502 = vld [vmem:[#allocation5 + $0x60] sm:$0xff]
    %v503 = vld [vmem:[#allocation5 + $0x68] sm:$0xff]
    %v504 = vld [vmem:[#allocation5 + $0x70] sm:$0xff]
    %v505 = vld [vmem:[#allocation5 + $0x78] sm:$0xff]
    %v506 = vld [vmem:[#allocation5 + $0x80] sm:$0xff]
    %v507 = vld [vmem:[#allocation5 + $0x88] sm:$0xff]
    %v508 = vld [vmem:[#allocation5 + $0x90] sm:$0xff]
    %v509 = vld [vmem:[#allocation5 + $0x98] sm:$0xff]
    %v510 = vld [vmem:[#allocation5 + $0xa0] sm:$0xff]
    %v511 = vld [vmem:[#allocation5 + $0xa8] sm:$0xff]
    %v512 = vld [vmem:[#allocation5 + $0xb0] sm:$0xff]
    %v513 = vld [vmem:[#allocation5 + $0xb8] sm:$0xff]
    %v514 = vld [vmem:[#allocation5 + $0xc0] sm:$0xff]
    %v515 = vld [vmem:[#allocation5 + $0xc8] sm:$0xff]
    %v516 = vld [vmem:[#allocation5 + $0xd0] sm:$0xff]
    %v517 = vld [vmem:[#allocation5 + $0xd8] sm:$0xff]
    %v518 = vld [vmem:[#allocation5 + $0xe0] sm:$0xff]
    %v519 = vld [vmem:[#allocation5 + $0xe8] sm:$0xff]
    %v520 = vld [vmem:[#allocation5 + $0xf0] sm:$0xff]
    %v521 = vld [vmem:[#allocation5 + $0xf8] sm:$0xff]
    %522 = vmatprep.subr.mxu0 %v521
    %523 = vmatpush1.msra.mxu0 %v520
    %524 = vmatprep.subr.mxu0 %v519
    %525 = vmatpush1.msra.mxu0 %v518
    %526 = vmatprep.subr.mxu0 %v517
    %527 = vmatpush1.msra.mxu0 %v516
    %528 = vmatprep.subr.mxu0 %v515
    %529 = vmatpush1.msra.mxu0 %v514
    %530 = vmatprep.subr.mxu0 %v513
    %531 = vmatpush1.msra.mxu0 %v512
    %532 = vmatprep.subr.mxu0 %v511
    %533 = vmatpush1.msra.mxu0 %v510
    %534 = vmatprep.subr.mxu0 %v509
    %535 = vmatpush1.msra.mxu0 %v508
    %536 = vmatprep.subr.mxu0 %v507
    %537 = vmatpush1.msra.mxu0 %v506
    %538 = vmatprep.subr.mxu0 %v505
    %539 = vmatpush1.msra.mxu0 %v504
    %540 = vmatprep.subr.mxu0 %v503
    %541 = vmatpush1.msra.mxu0 %v502
    %542 = vmatprep.subr.mxu0 %v501
    %543 = vmatpush1.msra.mxu0 %v500
    %544 = vmatprep.subr.mxu0 %v499
    %545 = vmatpush1.msra.mxu0 %v498
    %546 = vmatprep.subr.mxu0 %v497
    %547 = vmatpush1.msra.mxu0 %v496
    %548 = vmatprep.subr.mxu0 %v495
    %549 = vmatpush1.msra.mxu0 %v494
    %550 = vmatprep.subr.mxu0 %v493
    %551 = vmatpush1.msra.mxu0 %v492
    %552 = vmatprep.subr.mxu0 %v491
    %553 = vmatpush1.msra.mxu0 %v490
    %554 = vmatprep.subr.mxu0 0.0
    %555 = vmatpush2.msra.mxu0 0.0
    %556 = vmatprep.subr.mxu0 0.0
    %557 = vmatpush2.msra.mxu0 0.0
    %558 = vmatprep.subr.mxu0 0.0
    %559 = vmatpush2.msra.mxu0 0.0
    %560 = vmatprep.subr.mxu0 0.0
    %561 = vmatpush2.msra.mxu0 0.0
    %562 = vmatprep.subr.mxu0 0.0
    %563 = vmatpush2.msra.mxu0 0.0
    %564 = vmatprep.subr.mxu0 0.0
    %565 = vmatpush2.msra.mxu0 0.0
    %566 = vmatprep.subr.mxu0 0.0
    %567 = vmatpush2.msra.mxu0 0.0
    %568 = vmatprep.subr.mxu0 0.0
    %569 = vmatpush2.msra.mxu0 0.0
    %570 = vmatprep.subr.mxu0 0.0
    %571 = vmatpush2.msra.mxu0 0.0
    %572 = vmatprep.subr.mxu0 0.0
    %573 = vmatpush2.msra.mxu0 0.0
    %574 = vmatprep.subr.mxu0 0.0
    %575 = vmatpush2.msra.mxu0 0.0
    %576 = vmatprep.subr.mxu0 0.0
    %577 = vmatpush2.msra.mxu0 0.0
    %578 = vmatprep.subr.mxu0 0.0
    %579 = vmatpush2.msra.mxu0 0.0
    %580 = vmatprep.subr.mxu0 0.0
    %581 = vmatpush2.msra.mxu0 0.0
    %582 = vmatprep.subr.mxu0 0.0
    %583 = vmatpush2.msra.mxu0 0.0
    %584 = vmatprep.subr.mxu0 0.0
    %585 = vmatpush2.msra.mxu0 0.0
    %586 = vmatprep.mubr.f32.mxu0 0.0
    %587 = vmatmul.mubr.f32.gmra.mxu0 %v489
    %v588 = vpop.f32.mrf.mxu0
    %v589 = vadd.f32 0.0, %v588
    %v590 = vpop.f32.mrf.mxu0
    %v591 = vadd.f32 0.0, %v590
    %592 = vdwg.mxu0
    %v593 = vadd.f32 %v486, %v589
    %v594 = vtanh.pop %v593
    %v595 = vadd.f32 %v487, %v591
    %v596 = vtanh.pop %v595
    %v597 = vadd.f32 %v594, %v596
    %v598 = vmul.f32 %v597, %v480
    %v599 = vadd.f32 %v598, %v488
    %v600 = vxor.u32 %v599, 2147483648
    %v601 = vmul.f32 %v600, 1.442695
    %v602 = vpow.pop %v601
    %v603 = vadd.f32 %v602, 1.0
    %v604 = vrcp.pop %v603
    %v605 = vmul.f32 1.0, %v604
    %s606 = scalar_lea.vmem [#allocation3], 16
    %607 = vst [vmem:[%s606] sm:$0xff] %v605
    %s608 = smul.u32 3, 3
    %s609 = smul.addr %s608, 8
    %s610 = scalar_lea.vmem [#allocation2], %s609
    %v611 = vld [vmem:[%s610] sm:$0xff]
    %v612 = vld [vmem:[%s610 + $0x8] sm:$0xff]
    %v613 = vld [vmem:[%s610 + $0x10] sm:$0xff]
    %v614 = vtanh.pop %v605
    %v615 = vld [vmem:[#allocation5] sm:$0xff]
    %v616 = vld [vmem:[#allocation5 + $0x8] sm:$0xff]
    %v617 = vld [vmem:[#allocation5 + $0x10] sm:$0xff]
    %v618 = vld [vmem:[#allocation5 + $0x18] sm:$0xff]
    %v619 = vld [vmem:[#allocation5 + $0x20] sm:$0xff]
    %v620 = vld [vmem:[#allocation5 + $0x28] sm:$0xff]
    %v621 = vld [vmem:[#allocation5 + $0x30] sm:$0xff]
    %v622 = vld [vmem:[#allocation5 + $0x38] sm:$0xff]
    %v623 = vld [vmem:[#allocation5 + $0x40] sm:$0xff]
    %v624 = vld [vmem:[#allocation5 + $0x48] sm:$0xff]
    %v625 = vld [vmem:[#allocation5 + $0x50] sm:$0xff]
    %v626 = vld [vmem:[#allocation5 + $0x58] sm:$0xff]
    %v627 = vld [vmem:[#allocation5 + $0x60] sm:$0xff]
    %v628 = vld [vmem:[#allocation5 + $0x68] sm:$0xff]
    %v629 = vld [vmem:[#allocation5 + $0x70] sm:$0xff]
    %v630 = vld [vmem:[#allocation5 + $0x78] sm:$0xff]
    %v631 = vld [vmem:[#allocation5 + $0x80] sm:$0xff]
    %v632 = vld [vmem:[#allocation5 + $0x88] sm:$0xff]
    %v633 = vld [vmem:[#allocation5 + $0x90] sm:$0xff]
    %v634 = vld [vmem:[#allocation5 + $0x98] sm:$0xff]
    %v635 = vld [vmem:[#allocation5 + $0xa0] sm:$0xff]
    %v636 = vld [vmem:[#allocation5 + $0xa8] sm:$0xff]
    %v637 = vld [vmem:[#allocation5 + $0xb0] sm:$0xff]
    %v638 = vld [vmem:[#allocation5 + $0xb8] sm:$0xff]
    %v639 = vld [vmem:[#allocation5 + $0xc0] sm:$0xff]
    %v640 = vld [vmem:[#allocation5 + $0xc8] sm:$0xff]
    %v641 = vld [vmem:[#allocation5 + $0xd0] sm:$0xff]
    %v642 = vld [vmem:[#allocation5 + $0xd8] sm:$0xff]
    %v643 = vld [vmem:[#allocation5 + $0xe0] sm:$0xff]
    %v644 = vld [vmem:[#allocation5 + $0xe8] sm:$0xff]
    %v645 = vld [vmem:[#allocation5 + $0xf0] sm:$0xff]
    %v646 = vld [vmem:[#allocation5 + $0xf8] sm:$0xff]
    %647 = vmatprep.subr.mxu0 %v646
    %648 = vmatpush1.msra.mxu0 %v645
    %649 = vmatprep.subr.mxu0 %v644
    %650 = vmatpush1.msra.mxu0 %v643
    %651 = vmatprep.subr.mxu0 %v642
    %652 = vmatpush1.msra.mxu0 %v641
    %653 = vmatprep.subr.mxu0 %v640
    %654 = vmatpush1.msra.mxu0 %v639
    %655 = vmatprep.subr.mxu0 %v638
    %656 = vmatpush1.msra.mxu0 %v637
    %657 = vmatprep.subr.mxu0 %v636
    %658 = vmatpush1.msra.mxu0 %v635
    %659 = vmatprep.subr.mxu0 %v634
    %660 = vmatpush1.msra.mxu0 %v633
    %661 = vmatprep.subr.mxu0 %v632
    %662 = vmatpush1.msra.mxu0 %v631
    %663 = vmatprep.subr.mxu0 %v630
    %664 = vmatpush1.msra.mxu0 %v629
    %665 = vmatprep.subr.mxu0 %v628
    %666 = vmatpush1.msra.mxu0 %v627
    %667 = vmatprep.subr.mxu0 %v626
    %668 = vmatpush1.msra.mxu0 %v625
    %669 = vmatprep.subr.mxu0 %v624
    %670 = vmatpush1.msra.mxu0 %v623
    %671 = vmatprep.subr.mxu0 %v622
    %672 = vmatpush1.msra.mxu0 %v621
    %673 = vmatprep.subr.mxu0 %v620
    %674 = vmatpush1.msra.mxu0 %v619
    %675 = vmatprep.subr.mxu0 %v618
    %676 = vmatpush1.msra.mxu0 %v617
    %677 = vmatprep.subr.mxu0 %v616
    %678 = vmatpush1.msra.mxu0 %v615
    %679 = vmatprep.subr.mxu0 0.0
    %680 = vmatpush2.msra.mxu0 0.0
    %681 = vmatprep.subr.mxu0 0.0
    %682 = vmatpush2.msra.mxu0 0.0
    %683 = vmatprep.subr.mxu0 0.0
    %684 = vmatpush2.msra.mxu0 0.0
    %685 = vmatprep.subr.mxu0 0.0
    %686 = vmatpush2.msra.mxu0 0.0
    %687 = vmatprep.subr.mxu0 0.0
    %688 = vmatpush2.msra.mxu0 0.0
    %689 = vmatprep.subr.mxu0 0.0
    %690 = vmatpush2.msra.mxu0 0.0
    %691 = vmatprep.subr.mxu0 0.0
    %692 = vmatpush2.msra.mxu0 0.0
    %693 = vmatprep.subr.mxu0 0.0
    %694 = vmatpush2.msra.mxu0 0.0
    %695 = vmatprep.subr.mxu0 0.0
    %696 = vmatpush2.msra.mxu0 0.0
    %697 = vmatprep.subr.mxu0 0.0
    %698 = vmatpush2.msra.mxu0 0.0
    %699 = vmatprep.subr.mxu0 0.0
    %700 = vmatpush2.msra.mxu0 0.0
    %701 = vmatprep.subr.mxu0 0.0
    %702 = vmatpush2.msra.mxu0 0.0
    %703 = vmatprep.subr.mxu0 0.0
    %704 = vmatpush2.msra.mxu0 0.0
    %705 = vmatprep.subr.mxu0 0.0
    %706 = vmatpush2.msra.mxu0 0.0
    %707 = vmatprep.subr.mxu0 0.0
    %708 = vmatpush2.msra.mxu0 0.0
    %709 = vmatprep.subr.mxu0 0.0
    %710 = vmatpush2.msra.mxu0 0.0
    %711 = vmatprep.mubr.f32.mxu0 0.0
    %712 = vmatmul.mubr.f32.gmra.mxu0 %v614
    %v713 = vpop.f32.mrf.mxu0
    %v714 = vadd.f32 0.0, %v713
    %v715 = vpop.f32.mrf.mxu0
    %v716 = vadd.f32 0.0, %v715
    %717 = vdwg.mxu0
    %v718 = vadd.f32 %v611, %v714
    %v719 = vtanh.pop %v718
    %v720 = vadd.f32 %v612, %v716
    %v721 = vtanh.pop %v720
    %v722 = vadd.f32 %v719, %v721
    %v723 = vmul.f32 %v722, %v605
    %v724 = vadd.f32 %v723, %v613
    %v725 = vxor.u32 %v724, 2147483648
    %v726 = vmul.f32 %v725, 1.442695
    %v727 = vpow.pop %v726
    %v728 = vadd.f32 %v727, 1.0
    %v729 = vrcp.pop %v728
    %v730 = vmul.f32 1.0, %v729
    %s731 = scalar_lea.vmem [#allocation3], 24
    %732 = vst [vmem:[%s731] sm:$0xff] %v730
    %s733 = smul.u32 4, 3
    %s734 = smul.addr %s733, 8
    %s735 = scalar_lea.vmem [#allocation2], %s734
    %v736 = vld [vmem:[%s735] sm:$0xff]
    %v737 = vld [vmem:[%s735 + $0x8] sm:$0xff]
    %v738 = vld [vmem:[%s735 + $0x10] sm:$0xff]
    %v739 = vtanh.pop %v730
    %v740 = vld [vmem:[#allocation5] sm:$0xff]
    %v741 = vld [vmem:[#allocation5 + $0x8] sm:$0xff]
    %v742 = vld [vmem:[#allocation5 + $0x10] sm:$0xff]
    %v743 = vld [vmem:[#allocation5 + $0x18] sm:$0xff]
    %v744 = vld [vmem:[#allocation5 + $0x20] sm:$0xff]
    %v745 = vld [vmem:[#allocation5 + $0x28] sm:$0xff]
    %v746 = vld [vmem:[#allocation5 + $0x30] sm:$0xff]
    %v747 = vld [vmem:[#allocation5 + $0x38] sm:$0xff]
    %v748 = vld [vmem:[#allocation5 + $0x40] sm:$0xff]
    %v749 = vld [vmem:[#allocation5 + $0x48] sm:$0xff]
    %v750 = vld [vmem:[#allocation5 + $0x50] sm:$0xff]
    %v751 = vld [vmem:[#allocation5 + $0x58] sm:$0xff]
    %v752 = vld [vmem:[#allocation5 + $0x60] sm:$0xff]
    %v753 = vld [vmem:[#allocation5 + $0x68] sm:$0xff]
    %v754 = vld [vmem:[#allocation5 + $0x70] sm:$0xff]
    %v755 = vld [vmem:[#allocation5 + $0x78] sm:$0xff]
    %v756 = vld [vmem:[#allocation5 + $0x80] sm:$0xff]
    %v757 = vld [vmem:[#allocation5 + $0x88] sm:$0xff]
    %v758 = vld [vmem:[#allocation5 + $0x90] sm:$0xff]
    %v759 = vld [vmem:[#allocation5 + $0x98] sm:$0xff]
    %v760 = vld [vmem:[#allocation5 + $0xa0] sm:$0xff]
    %v761 = vld [vmem:[#allocation5 + $0xa8] sm:$0xff]
    %v762 = vld [vmem:[#allocation5 + $0xb0] sm:$0xff]
    %v763 = vld [vmem:[#allocation5 + $0xb8] sm:$0xff]
    %v764 = vld [vmem:[#allocation5 + $0xc0] sm:$0xff]
    %v765 = vld [vmem:[#allocation5 + $0xc8] sm:$0xff]
    %v766 = vld [vmem:[#allocation5 + $0xd0] sm:$0xff]
    %v767 = vld [vmem:[#allocation5 + $0xd8] sm:$0xff]
    %v768 = vld [vmem:[#allocation5 + $0xe0] sm:$0xff]
    %v769 = vld [vmem:[#allocation5 + $0xe8] sm:$0xff]
    %v770 = vld [vmem:[#allocation5 + $0xf0] sm:$0xff]
    %v771 = vld [vmem:[#allocation5 + $0xf8] sm:$0xff]
    %772 = vmatprep.subr.mxu0 %v771
    %773 = vmatpush1.msra.mxu0 %v770
    %774 = vmatprep.subr.mxu0 %v769
    %775 = vmatpush1.msra.mxu0 %v768
    %776 = vmatprep.subr.mxu0 %v767
    %777 = vmatpush1.msra.mxu0 %v766
    %778 = vmatprep.subr.mxu0 %v765
    %779 = vmatpush1.msra.mxu0 %v764
    %780 = vmatprep.subr.mxu0 %v763
    %781 = vmatpush1.msra.mxu0 %v762
    %782 = vmatprep.subr.mxu0 %v761
    %783 = vmatpush1.msra.mxu0 %v760
    %784 = vmatprep.subr.mxu0 %v759
    %785 = vmatpush1.msra.mxu0 %v758
    %786 = vmatprep.subr.mxu0 %v757
    %787 = vmatpush1.msra.mxu0 %v756
    %788 = vmatprep.subr.mxu0 %v755
    %789 = vmatpush1.msra.mxu0 %v754
    %790 = vmatprep.subr.mxu0 %v753
    %791 = vmatpush1.msra.mxu0 %v752
    %792 = vmatprep.subr.mxu0 %v751
    %793 = vmatpush1.msra.mxu0 %v750
    %794 = vmatprep.subr.mxu0 %v749
    %795 = vmatpush1.msra.mxu0 %v748
    %796 = vmatprep.subr.mxu0 %v747
    %797 = vmatpush1.msra.mxu0 %v746
    %798 = vmatprep.subr.mxu0 %v745
    %799 = vmatpush1.msra.mxu0 %v744
    %800 = vmatprep.subr.mxu0 %v743
    %801 = vmatpush1.msra.mxu0 %v742
    %802 = vmatprep.subr.mxu0 %v741
    %803 = vmatpush1.msra.mxu0 %v740
    %804 = vmatprep.subr.mxu0 0.0
    %805 = vmatpush2.msra.mxu0 0.0
    %806 = vmatprep.subr.mxu0 0.0
    %807 = vmatpush2.msra.mxu0 0.0
    %808 = vmatprep.subr.mxu0 0.0
    %809 = vmatpush2.msra.mxu0 0.0
    %810 = vmatprep.subr.mxu0 0.0
    %811 = vmatpush2.msra.mxu0 0.0
    %812 = vmatprep.subr.mxu0 0.0
    %813 = vmatpush2.msra.mxu0 0.0
    %814 = vmatprep.subr.mxu0 0.0
    %815 = vmatpush2.msra.mxu0 0.0
    %816 = vmatprep.subr.mxu0 0.0
    %817 = vmatpush2.msra.mxu0 0.0
    %818 = vmatprep.subr.mxu0 0.0
    %819 = vmatpush2.msra.mxu0 0.0
    %820 = vmatprep.subr.mxu0 0.0
    %821 = vmatpush2.msra.mxu0 0.0
    %822 = vmatprep.subr.mxu0 0.0
    %823 = vmatpush2.msra.mxu0 0.0
    %824 = vmatprep.subr.mxu0 0.0
    %825 = vmatpush2.msra.mxu0 0.0
    %826 = vmatprep.subr.mxu0 0.0
    %827 = vmatpush2.msra.mxu0 0.0
    %828 = vmatprep.subr.mxu0 0.0
    %829 = vmatpush2.msra.mxu0 0.0
    %830 = vmatprep.subr.mxu0 0.0
    %831 = vmatpush2.msra.mxu0 0.0
    %832 = vmatprep.subr.mxu0 0.0
    %833 = vmatpush2.msra.mxu0 0.0
    %834 = vmatprep.subr.mxu0 0.0
    %835 = vmatpush2.msra.mxu0 0.0
    %836 = vmatprep.mubr.f32.mxu0 0.0
    %837 = vmatmul.mubr.f32.gmra.mxu0 %v739
    %v838 = vpop.f32.mrf.mxu0
    %v839 = vadd.f32 0.0, %v838
    %v840 = vpop.f32.mrf.mxu0
    %v841 = vadd.f32 0.0, %v840
    %842 = vdwg.mxu0
    %v843 = vadd.f32 %v736, %v839
    %v844 = vtanh.pop %v843
    %v845 = vadd.f32 %v737, %v841
    %v846 = vtanh.pop %v845
    %v847 = vadd.f32 %v844, %v846
    %v848 = vmul.f32 %v847, %v730
    %v849 = vadd.f32 %v848, %v738
    %v850 = vxor.u32 %v849, 2147483648
    %v851 = vmul.f32 %v850, 1.442695
    %v852 = vpow.pop %v851
    %v853 = vadd.f32 %v852, 1.0
    %v854 = vrcp.pop %v853
    %v855 = vmul.f32 1.0, %v854
    %s856 = scalar_lea.vmem [#allocation3], 32
    %857 = vst [vmem:[%s856] sm:$0xff] %v855
    %s858 = smul.u32 5, 3
    %s859 = smul.addr %s858, 8
    %s860 = scalar_lea.vmem [#allocation2], %s859
    %v861 = vld [vmem:[%s860] sm:$0xff]
    %v862 = vld [vmem:[%s860 + $0x8] sm:$0xff]
    %v863 = vld [vmem:[%s860 + $0x10] sm:$0xff]
    %v864 = vtanh.pop %v855
    %v865 = vld [vmem:[#allocation5] sm:$0xff]
    %v866 = vld [vmem:[#allocation5 + $0x8] sm:$0xff]
    %v867 = vld [vmem:[#allocation5 + $0x10] sm:$0xff]
    %v868 = vld [vmem:[#allocation5 + $0x18] sm:$0xff]
    %v869 = vld [vmem:[#allocation5 + $0x20] sm:$0xff]
    %v870 = vld [vmem:[#allocation5 + $0x28] sm:$0xff]
    %v871 = vld [vmem:[#allocation5 + $0x30] sm:$0xff]
    %v872 = vld [vmem:[#allocation5 + $0x38] sm:$0xff]
    %v873 = vld [vmem:[#allocation5 + $0x40] sm:$0xff]
    %v874 = vld [vmem:[#allocation5 + $0x48] sm:$0xff]
    %v875 = vld [vmem:[#allocation5 + $0x50] sm:$0xff]
    %v876 = vld [vmem:[#allocation5 + $0x58] sm:$0xff]
    %v877 = vld [vmem:[#allocation5 + $0x60] sm:$0xff]
    %v878 = vld [vmem:[#allocation5 + $0x68] sm:$0xff]
    %v879 = vld [vmem:[#allocation5 + $0x70] sm:$0xff]
    %v880 = vld [vmem:[#allocation5 + $0x78] sm:$0xff]
    %v881 = vld [vmem:[#allocation5 + $0x80] sm:$0xff]
    %v882 = vld [vmem:[#allocation5 + $0x88] sm:$0xff]
    %v883 = vld [vmem:[#allocation5 + $0x90] sm:$0xff]
    %v884 = vld [vmem:[#allocation5 + $0x98] sm:$0xff]
    %v885 = vld [vmem:[#allocation5 + $0xa0] sm:$0xff]
    %v886 = vld [vmem:[#allocation5 + $0xa8] sm:$0xff]
    %v887 = vld [vmem:[#allocation5 + $0xb0] sm:$0xff]
    %v888 = vld [vmem:[#allocation5 + $0xb8] sm:$0xff]
    %v889 = vld [vmem:[#allocation5 + $0xc0] sm:$0xff]
    %v890 = vld [vmem:[#allocation5 + $0xc8] sm:$0xff]
    %v891 = vld [vmem:[#allocation5 + $0xd0] sm:$0xff]
    %v892 = vld [vmem:[#allocation5 + $0xd8] sm:$0xff]
    %v893 = vld [vmem:[#allocation5 + $0xe0] sm:$0xff]
    %v894 = vld [vmem:[#allocation5 + $0xe8] sm:$0xff]
    %v895 = vld [vmem:[#allocation5 + $0xf0] sm:$0xff]
    %v896 = vld [vmem:[#allocation5 + $0xf8] sm:$0xff]
    %897 = vmatprep.subr.mxu0 %v896
    %898 = vmatpush1.msra.mxu0 %v895
    %899 = vmatprep.subr.mxu0 %v894
    %900 = vmatpush1.msra.mxu0 %v893
    %901 = vmatprep.subr.mxu0 %v892
    %902 = vmatpush1.msra.mxu0 %v891
    %903 = vmatprep.subr.mxu0 %v890
    %904 = vmatpush1.msra.mxu0 %v889
    %905 = vmatprep.subr.mxu0 %v888
    %906 = vmatpush1.msra.mxu0 %v887
    %907 = vmatprep.subr.mxu0 %v886
    %908 = vmatpush1.msra.mxu0 %v885
    %909 = vmatprep.subr.mxu0 %v884
    %910 = vmatpush1.msra.mxu0 %v883
    %911 = vmatprep.subr.mxu0 %v882
    %912 = vmatpush1.msra.mxu0 %v881
    %913 = vmatprep.subr.mxu0 %v880
    %914 = vmatpush1.msra.mxu0 %v879
    %915 = vmatprep.subr.mxu0 %v878
    %916 = vmatpush1.msra.mxu0 %v877
    %917 = vmatprep.subr.mxu0 %v876
    %918 = vmatpush1.msra.mxu0 %v875
    %919 = vmatprep.subr.mxu0 %v874
    %920 = vmatpush1.msra.mxu0 %v873
    %921 = vmatprep.subr.mxu0 %v872
    %922 = vmatpush1.msra.mxu0 %v871
    %923 = vmatprep.subr.mxu0 %v870
    %924 = vmatpush1.msra.mxu0 %v869
    %925 = vmatprep.subr.mxu0 %v868
    %926 = vmatpush1.msra.mxu0 %v867
    %927 = vmatprep.subr.mxu0 %v866
    %928 = vmatpush1.msra.mxu0 %v865
    %929 = vmatprep.subr.mxu0 0.0
    %930 = vmatpush2.msra.mxu0 0.0
    %931 = vmatprep.subr.mxu0 0.0
    %932 = vmatpush2.msra.mxu0 0.0
    %933 = vmatprep.subr.mxu0 0.0
    %934 = vmatpush2.msra.mxu0 0.0
    %935 = vmatprep.subr.mxu0 0.0
    %936 = vmatpush2.msra.mxu0 0.0
    %937 = vmatprep.subr.mxu0 0.0
    %938 = vmatpush2.msra.mxu0 0.0
    %939 = vmatprep.subr.mxu0 0.0
    %940 = vmatpush2.msra.mxu0 0.0
    %941 = vmatprep.subr.mxu0 0.0
    %942 = vmatpush2.msra.mxu0 0.0
    %943 = vmatprep.subr.mxu0 0.0
    %944 = vmatpush2.msra.mxu0 0.0
    %945 = vmatprep.subr.mxu0 0.0
    %946 = vmatpush2.msra.mxu0 0.0
    %947 = vmatprep.subr.mxu0 0.0
    %948 = vmatpush2.msra.mxu0 0.0
    %949 = vmatprep.subr.mxu0 0.0
    %950 = vmatpush2.msra.mxu0 0.0
    %951 = vmatprep.subr.mxu0 0.0
    %952 = vmatpush2.msra.mxu0 0.0
    %953 = vmatprep.subr.mxu0 0.0
    %954 = vmatpush2.msra.mxu0 0.0
    %955 = vmatprep.subr.mxu0 0.0
    %956 = vmatpush2.msra.mxu0 0.0
    %957 = vmatprep.subr.mxu0 0.0
    %958 = vmatpush2.msra.mxu0 0.0
    %959 = vmatprep.subr.mxu0 0.0
    %960 = vmatpush2.msra.mxu0 0.0
    %961 = vmatprep.mubr.f32.mxu0 0.0
    %962 = vmatmul.mubr.f32.gmra.mxu0 %v864
    %v963 = vpop.f32.mrf.mxu0
    %v964 = vadd.f32 0.0, %v963
    %v965 = vpop.f32.mrf.mxu0
    %v966 = vadd.f32 0.0, %v965
    %967 = vdwg.mxu0
    %v968 = vadd.f32 %v861, %v964
    %v969 = vtanh.pop %v968
    %v970 = vadd.f32 %v862, %v966
    %v971 = vtanh.pop %v970
    %v972 = vadd.f32 %v969, %v971
    %v973 = vmul.f32 %v972, %v855
    %v974 = vadd.f32 %v973, %v863
    %v975 = vxor.u32 %v974, 2147483648
    %v976 = vmul.f32 %v975, 1.442695
    %v977 = vpow.pop %v976
    %v978 = vadd.f32 %v977, 1.0
    %v979 = vrcp.pop %v978
    %v980 = vmul.f32 1.0, %v979
    %s981 = scalar_lea.vmem [#allocation3], 40
    %982 = vst [vmem:[%s981] sm:$0xff] %v980
    %s983 = smul.u32 6, 3
    %s984 = smul.addr %s983, 8
    %s985 = scalar_lea.vmem [#allocation2], %s984
    %v986 = vld [vmem:[%s985] sm:$0xff]
    %v987 = vld [vmem:[%s985 + $0x8] sm:$0xff]
    %v988 = vld [vmem:[%s985 + $0x10] sm:$0xff]
    %v989 = vtanh.pop %v980
    %v990 = vld [vmem:[#allocation5] sm:$0xff]
    %v991 = vld [vmem:[#allocation5 + $0x8] sm:$0xff]
    %v992 = vld [vmem:[#allocation5 + $0x10] sm:$0xff]
    %v993 = vld [vmem:[#allocation5 + $0x18] sm:$0xff]
    %v994 = vld [vmem:[#allocation5 + $0x20] sm:$0xff]
    %v995 = vld [vmem:[#allocation5 + $0x28] sm:$0xff]
    %v996 = vld [vmem:[#allocation5 + $0x30] sm:$0xff]
    %v997 = vld [vmem:[#allocation5 + $0x38] sm:$0xff]
    %v998 = vld [vmem:[#allocation5 + $0x40] sm:$0xff]
    %v999 = vld [vmem:[#allocation5 + $0x48] sm:$0xff]
    %v1000 = vld [vmem:[#allocation5 + $0x50] sm:$0xff]
    %v1001 = vld [vmem:[#allocation5 + $0x58] sm:$0xff]
    %v1002 = vld [vmem:[#allocation5 + $0x60] sm:$0xff]
    %v1003 = vld [vmem:[#allocation5 + $0x68] sm:$0xff]
    %v1004 = vld [vmem:[#allocation5 + $0x70] sm:$0xff]
    %v1005 = vld [vmem:[#allocation5 + $0x78] sm:$0xff]
    %v1006 = vld [vmem:[#allocation5 + $0x80] sm:$0xff]
    %v1007 = vld [vmem:[#allocation5 + $0x88] sm:$0xff]
    %v1008 = vld [vmem:[#allocation5 + $0x90] sm:$0xff]
    %v1009 = vld [vmem:[#allocation5 + $0x98] sm:$0xff]
    %v1010 = vld [vmem:[#allocation5 + $0xa0] sm:$0xff]
    %v1011 = vld [vmem:[#allocation5 + $0xa8] sm:$0xff]
    %v1012 = vld [vmem:[#allocation5 + $0xb0] sm:$0xff]
    %v1013 = vld [vmem:[#allocation5 + $0xb8] sm:$0xff]
    %v1014 = vld [vmem:[#allocation5 + $0xc0] sm:$0xff]
    %v1015 = vld [vmem:[#allocation5 + $0xc8] sm:$0xff]
    %v1016 = vld [vmem:[#allocation5 + $0xd0] sm:$0xff]
    %v1017 = vld [vmem:[#allocation5 + $0xd8] sm:$0xff]
    %v1018 = vld [vmem:[#allocation5 + $0xe0] sm:$0xff]
    %v1019 = vld [vmem:[#allocation5 + $0xe8] sm:$0xff]
    %v1020 = vld [vmem:[#allocation5 + $0xf0] sm:$0xff]
    %v1021 = vld [vmem:[#allocation5 + $0xf8] sm:$0xff]
    %1022 = vmatprep.subr.mxu0 %v1021
    %1023 = vmatpush1.msra.mxu0 %v1020
    %1024 = vmatprep.subr.mxu0 %v1019
    %1025 = vmatpush1.msra.mxu0 %v1018
    %1026 = vmatprep.subr.mxu0 %v1017
    %1027 = vmatpush1.msra.mxu0 %v1016
    %1028 = vmatprep.subr.mxu0 %v1015
    %1029 = vmatpush1.msra.mxu0 %v1014
    %1030 = vmatprep.subr.mxu0 %v1013
    %1031 = vmatpush1.msra.mxu0 %v1012
    %1032 = vmatprep.subr.mxu0 %v1011
    %1033 = vmatpush1.msra.mxu0 %v1010
    %1034 = vmatprep.subr.mxu0 %v1009
    %1035 = vmatpush1.msra.mxu0 %v1008
    %1036 = vmatprep.subr.mxu0 %v1007
    %1037 = vmatpush1.msra.mxu0 %v1006
    %1038 = vmatprep.subr.mxu0 %v1005
    %1039 = vmatpush1.msra.mxu0 %v1004
    %1040 = vmatprep.subr.mxu0 %v1003
    %1041 = vmatpush1.msra.mxu0 %v1002
    %1042 = vmatprep.subr.mxu0 %v1001
    %1043 = vmatpush1.msra.mxu0 %v1000
    %1044 = vmatprep.subr.mxu0 %v999
    %1045 = vmatpush1.msra.mxu0 %v998
    %1046 = vmatprep.subr.mxu0 %v997
    %1047 = vmatpush1.msra.mxu0 %v996
    %1048 = vmatprep.subr.mxu0 %v995
    %1049 = vmatpush1.msra.mxu0 %v994
    %1050 = vmatprep.subr.mxu0 %v993
    %1051 = vmatpush1.msra.mxu0 %v992
    %1052 = vmatprep.subr.mxu0 %v991
    %1053 = vmatpush1.msra.mxu0 %v990
    %1054 = vmatprep.subr.mxu0 0.0
    %1055 = vmatpush2.msra.mxu0 0.0
    %1056 = vmatprep.subr.mxu0 0.0
    %1057 = vmatpush2.msra.mxu0 0.0
    %1058 = vmatprep.subr.mxu0 0.0
    %1059 = vmatpush2.msra.mxu0 0.0
    %1060 = vmatprep.subr.mxu0 0.0
    %1061 = vmatpush2.msra.mxu0 0.0
    %1062 = vmatprep.subr.mxu0 0.0
    %1063 = vmatpush2.msra.mxu0 0.0
    %1064 = vmatprep.subr.mxu0 0.0
    %1065 = vmatpush2.msra.mxu0 0.0
    %1066 = vmatprep.subr.mxu0 0.0
    %1067 = vmatpush2.msra.mxu0 0.0
    %1068 = vmatprep.subr.mxu0 0.0
    %1069 = vmatpush2.msra.mxu0 0.0
    %1070 = vmatprep.subr.mxu0 0.0
    %1071 = vmatpush2.msra.mxu0 0.0
    %1072 = vmatprep.subr.mxu0 0.0
    %1073 = vmatpush2.msra.mxu0 0.0
    %1074 = vmatprep.subr.mxu0 0.0
    %1075 = vmatpush2.msra.mxu0 0.0
    %1076 = vmatprep.subr.mxu0 0.0
    %1077 = vmatpush2.msra.mxu0 0.0
    %1078 = vmatprep.subr.mxu0 0.0
    %1079 = vmatpush2.msra.mxu0 0.0
    %1080 = vmatprep.subr.mxu0 0.0
    %1081 = vmatpush2.msra.mxu0 0.0
    %1082 = vmatprep.subr.mxu0 0.0
    %1083 = vmatpush2.msra.mxu0 0.0
    %1084 = vmatprep.subr.mxu0 0.0
    %1085 = vmatpush2.msra.mxu0 0.0
    %1086 = vmatprep.mubr.f32.mxu0 0.0
    %1087 = vmatmul.mubr.f32.gmra.mxu0 %v989
    %v1088 = vpop.f32.mrf.mxu0
    %v1089 = vadd.f32 0.0, %v1088
    %v1090 = vpop.f32.mrf.mxu0
    %v1091 = vadd.f32 0.0, %v1090
    %1092 = vdwg.mxu0
    %v1093 = vadd.f32 %v986, %v1089
    %v1094 = vtanh.pop %v1093
    %v1095 = vadd.f32 %v987, %v1091
    %v1096 = vtanh.pop %v1095
    %v1097 = vadd.f32 %v1094, %v1096
    %v1098 = vmul.f32 %v1097, %v980
    %v1099 = vadd.f32 %v1098, %v988
    %v1100 = vxor.u32 %v1099, 2147483648
    %v1101 = vmul.f32 %v1100, 1.442695
    %v1102 = vpow.pop %v1101
    %v1103 = vadd.f32 %v1102, 1.0
    %v1104 = vrcp.pop %v1103
    %v1105 = vmul.f32 1.0, %v1104
    %s1106 = scalar_lea.vmem [#allocation3], 48
    %1107 = vst [vmem:[%s1106] sm:$0xff] %v1105
    %s1108 = smul.u32 7, 3
    %s1109 = smul.addr %s1108, 8
    %s1110 = scalar_lea.vmem [#allocation2], %s1109
    %v1111 = vld [vmem:[%s1110] sm:$0xff]
    %v1112 = vld [vmem:[%s1110 + $0x8] sm:$0xff]
    %v1113 = vld [vmem:[%s1110 + $0x10] sm:$0xff]
    %v1114 = vtanh.pop %v1105
    %v1115 = vld [vmem:[#allocation5] sm:$0xff]
    %v1116 = vld [vmem:[#allocation5 + $0x8] sm:$0xff]
    %v1117 = vld [vmem:[#allocation5 + $0x10] sm:$0xff]
    %v1118 = vld [vmem:[#allocation5 + $0x18] sm:$0xff]
    %v1119 = vld [vmem:[#allocation5 + $0x20] sm:$0xff]
    %v1120 = vld [vmem:[#allocation5 + $0x28] sm:$0xff]
    %v1121 = vld [vmem:[#allocation5 + $0x30] sm:$0xff]
    %v1122 = vld [vmem:[#allocation5 + $0x38] sm:$0xff]
    %v1123 = vld [vmem:[#allocation5 + $0x40] sm:$0xff]
    %v1124 = vld [vmem:[#allocation5 + $0x48] sm:$0xff]
    %v1125 = vld [vmem:[#allocation5 + $0x50] sm:$0xff]
    %v1126 = vld [vmem:[#allocation5 + $0x58] sm:$0xff]
    %v1127 = vld [vmem:[#allocation5 + $0x60] sm:$0xff]
    %v1128 = vld [vmem:[#allocation5 + $0x68] sm:$0xff]
    %v1129 = vld [vmem:[#allocation5 + $0x70] sm:$0xff]
    %v1130 = vld [vmem:[#allocation5 + $0x78] sm:$0xff]
    %v1131 = vld [vmem:[#allocation5 + $0x80] sm:$0xff]
    %v1132 = vld [vmem:[#allocation5 + $0x88] sm:$0xff]
    %v1133 = vld [vmem:[#allocation5 + $0x90] sm:$0xff]
    %v1134 = vld [vmem:[#allocation5 + $0x98] sm:$0xff]
    %v1135 = vld [vmem:[#allocation5 + $0xa0] sm:$0xff]
    %v1136 = vld [vmem:[#allocation5 + $0xa8] sm:$0xff]
    %v1137 = vld [vmem:[#allocation5 + $0xb0] sm:$0xff]
    %v1138 = vld [vmem:[#allocation5 + $0xb8] sm:$0xff]
    %v1139 = vld [vmem:[#allocation5 + $0xc0] sm:$0xff]
    %v1140 = vld [vmem:[#allocation5 + $0xc8] sm:$0xff]
    %v1141 = vld [vmem:[#allocation5 + $0xd0] sm:$0xff]
    %v1142 = vld [vmem:[#allocation5 + $0xd8] sm:$0xff]
    %v1143 = vld [vmem:[#allocation5 + $0xe0] sm:$0xff]
    %v1144 = vld [vmem:[#allocation5 + $0xe8] sm:$0xff]
    %v1145 = vld [vmem:[#allocation5 + $0xf0] sm:$0xff]
    %v1146 = vld [vmem:[#allocation5 + $0xf8] sm:$0xff]
    %1147 = vmatprep.subr.mxu0 %v1146
    %1148 = vmatpush1.msra.mxu0 %v1145
    %1149 = vmatprep.subr.mxu0 %v1144
    %1150 = vmatpush1.msra.mxu0 %v1143
    %1151 = vmatprep.subr.mxu0 %v1142
    %1152 = vmatpush1.msra.mxu0 %v1141
    %1153 = vmatprep.subr.mxu0 %v1140
    %1154 = vmatpush1.msra.mxu0 %v1139
    %1155 = vmatprep.subr.mxu0 %v1138
    %1156 = vmatpush1.msra.mxu0 %v1137
    %1157 = vmatprep.subr.mxu0 %v1136
    %1158 = vmatpush1.msra.mxu0 %v1135
    %1159 = vmatprep.subr.mxu0 %v1134
    %1160 = vmatpush1.msra.mxu0 %v1133
    %1161 = vmatprep.subr.mxu0 %v1132
    %1162 = vmatpush1.msra.mxu0 %v1131
    %1163 = vmatprep.subr.mxu0 %v1130
    %1164 = vmatpush1.msra.mxu0 %v1129
    %1165 = vmatprep.subr.mxu0 %v1128
    %1166 = vmatpush1.msra.mxu0 %v1127
    %1167 = vmatprep.subr.mxu0 %v1126
    %1168 = vmatpush1.msra.mxu0 %v1125
    %1169 = vmatprep.subr.mxu0 %v1124
    %1170 = vmatpush1.msra.mxu0 %v1123
    %1171 = vmatprep.subr.mxu0 %v1122
    %1172 = vmatpush1.msra.mxu0 %v1121
    %1173 = vmatprep.subr.mxu0 %v1120
    %1174 = vmatpush1.msra.mxu0 %v1119
    %1175 = vmatprep.subr.mxu0 %v1118
    %1176 = vmatpush1.msra.mxu0 %v1117
    %1177 = vmatprep.subr.mxu0 %v1116
    %1178 = vmatpush1.msra.mxu0 %v1115
    %1179 = vmatprep.subr.mxu0 0.0
    %1180 = vmatpush2.msra.mxu0 0.0
    %1181 = vmatprep.subr.mxu0 0.0
    %1182 = vmatpush2.msra.mxu0 0.0
    %1183 = vmatprep.subr.mxu0 0.0
    %1184 = vmatpush2.msra.mxu0 0.0
    %1185 = vmatprep.subr.mxu0 0.0
    %1186 = vmatpush2.msra.mxu0 0.0
    %1187 = vmatprep.subr.mxu0 0.0
    %1188 = vmatpush2.msra.mxu0 0.0
    %1189 = vmatprep.subr.mxu0 0.0
    %1190 = vmatpush2.msra.mxu0 0.0
    %1191 = vmatprep.subr.mxu0 0.0
    %1192 = vmatpush2.msra.mxu0 0.0
    %1193 = vmatprep.subr.mxu0 0.0
    %1194 = vmatpush2.msra.mxu0 0.0
    %1195 = vmatprep.subr.mxu0 0.0
    %1196 = vmatpush2.msra.mxu0 0.0
    %1197 = vmatprep.subr.mxu0 0.0
    %1198 = vmatpush2.msra.mxu0 0.0
    %1199 = vmatprep.subr.mxu0 0.0
    %1200 = vmatpush2.msra.mxu0 0.0
    %1201 = vmatprep.subr.mxu0 0.0
    %1202 = vmatpush2.msra.mxu0 0.0
    %1203 = vmatprep.subr.mxu0 0.0
    %1204 = vmatpush2.msra.mxu0 0.0
    %1205 = vmatprep.subr.mxu0 0.0
    %1206 = vmatpush2.msra.mxu0 0.0
    %1207 = vmatprep.subr.mxu0 0.0
    %1208 = vmatpush2.msra.mxu0 0.0
    %1209 = vmatprep.subr.mxu0 0.0
    %1210 = vmatpush2.msra.mxu0 0.0
    %1211 = vmatprep.mubr.f32.mxu0 0.0
    %1212 = vmatmul.mubr.f32.gmra.mxu0 %v1114
    %v1213 = vpop.f32.mrf.mxu0
    %v1214 = vadd.f32 0.0, %v1213
    %v1215 = vpop.f32.mrf.mxu0
    %v1216 = vadd.f32 0.0, %v1215
    %1217 = vdwg.mxu0
    %v1218 = vadd.f32 %v1111, %v1214
    %v1219 = vtanh.pop %v1218
    %v1220 = vadd.f32 %v1112, %v1216
    %v1221 = vtanh.pop %v1220
    %v1222 = vadd.f32 %v1219, %v1221
    %v1223 = vmul.f32 %v1222, %v1105
    %v1224 = vadd.f32 %v1223, %v1113
    %v1225 = vxor.u32 %v1224, 2147483648
    %v1226 = vmul.f32 %v1225, 1.442695
    %v1227 = vpow.pop %v1226
    %v1228 = vadd.f32 %v1227, 1.0
    %v1229 = vrcp.pop %v1228
    %v1230 = vmul.f32 1.0, %v1229
    %s1231 = scalar_lea.vmem [#allocation3], 56
    %1232 = vst [vmem:[%s1231] sm:$0xff] %v1230
    %1233 = vst [vmem:[#allocation4] sm:$0xff] %v1230
    %v1234 = vld [vmem:[#allocation3] sm:$0xff]
    %v1235 = vld [vmem:[#allocation3 + $0x8] sm:$0xff]
    %v1236 = vld [vmem:[#allocation3 + $0x10] sm:$0xff]
    %v1237 = vld [vmem:[#allocation3 + $0x18] sm:$0xff]
    %v1238 = vld [vmem:[#allocation3 + $0x20] sm:$0xff]
    %v1239 = vld [vmem:[#allocation3 + $0x28] sm:$0xff]
    %v1240 = vld [vmem:[#allocation3 + $0x30] sm:$0xff]
    %v1241 = vld [vmem:[#allocation3 + $0x38] sm:$0xff]
    %v1242 = vld [vmem:[#allocation8] sm:$0xff]
    %v1243 = vld [vmem:[#allocation8 + $0x8] sm:$0xff]
    %v1244 = vld [vmem:[#allocation8 + $0x10] sm:$0xff]
    %v1245 = vld [vmem:[#allocation8 + $0x18] sm:$0xff]
    %v1246 = vld [vmem:[#allocation8 + $0x20] sm:$0xff]
    %v1247 = vld [vmem:[#allocation8 + $0x28] sm:$0xff]
    %v1248 = vld [vmem:[#allocation8 + $0x30] sm:$0xff]
    %v1249 = vld [vmem:[#allocation8 + $0x38] sm:$0xff]
    %v1250 = vld [vmem:[#allocation8 + $0x40] sm:$0xff]
    %v1251 = vld [vmem:[#allocation8 + $0x48] sm:$0xff]
    %v1252 = vld [vmem:[#allocation8 + $0x50] sm:$0xff]
    %v1253 = vld [vmem:[#allocation8 + $0x58] sm:$0xff]
    %v1254 = vld [vmem:[#allocation8 + $0x60] sm:$0xff]
    %v1255 = vld [vmem:[#allocation8 + $0x68] sm:$0xff]
    %v1256 = vld [vmem:[#allocation8 + $0x70] sm:$0xff]
    %v1257 = vld [vmem:[#allocation8 + $0x78] sm:$0xff]
    %v1258 = vld [vmem:[%s5] sm:$0x1]
    %v1260 = vlaneseq
    %v1261 = vshrl.u32 %v1260, 7
    %v1262 = vsub.s32 0, %v1261
    %v1263 = vrot.slane %v1258, %v1262
    %1265 = vmatprep.subr.mxu0 0.0
    %1266 = vmatpush1.msra.mxu0 %v1257
    %1267 = vmatprep.subr.mxu0 0.0
    %1268 = vmatpush1.msra.mxu0 %v1256
    %1269 = vmatprep.subr.mxu0 0.0
    %1270 = vmatpush1.msra.mxu0 %v1255
    %1271 = vmatprep.subr.mxu0 0.0
    %1272 = vmatpush1.msra.mxu0 %v1254
    %1273 = vmatprep.subr.mxu0 0.0
    %1274 = vmatpush1.msra.mxu0 %v1253
    %1275 = vmatprep.subr.mxu0 0.0
    %1276 = vmatpush1.msra.mxu0 %v1252
    %1277 = vmatprep.subr.mxu0 0.0
    %1278 = vmatpush1.msra.mxu0 %v1251
    %1279 = vmatprep.subr.mxu0 0.0
    %1280 = vmatpush1.msra.mxu0 %v1250
    %1281 = vmatprep.subr.mxu0 0.0
    %1282 = vmatpush1.msra.mxu0 %v1249
    %1283 = vmatprep.subr.mxu0 0.0
    %1284 = vmatpush1.msra.mxu0 %v1248
    %1285 = vmatprep.subr.mxu0 0.0
    %1286 = vmatpush1.msra.mxu0 %v1247
    %1287 = vmatprep.subr.mxu0 0.0
    %1288 = vmatpush1.msra.mxu0 %v1246
    %1289 = vmatprep.subr.mxu0 0.0
    %1290 = vmatpush1.msra.mxu0 %v1245
    %1291 = vmatprep.subr.mxu0 0.0
    %1292 = vmatpush1.msra.mxu0 %v1244
    %1293 = vmatprep.subr.mxu0 0.0
    %1294 = vmatpush1.msra.mxu0 %v1243
    %1295 = vmatprep.subr.mxu0 0.0
    %1296 = vmatpush1.msra.mxu0 %v1242
    %1297 = vmatprep.subr.mxu0 0.0
    %1298 = vmatpush2.msra.mxu0 0.0
    %1299 = vmatprep.subr.mxu0 0.0
    %1300 = vmatpush2.msra.mxu0 0.0
    %1301 = vmatprep.subr.mxu0 0.0
    %1302 = vmatpush2.msra.mxu0 0.0
    %1303 = vmatprep.subr.mxu0 0.0
    %1304 = vmatpush2.msra.mxu0 0.0
    %1305 = vmatprep.subr.mxu0 0.0
    %1306 = vmatpush2.msra.mxu0 0.0
    %1307 = vmatprep.subr.mxu0 0.0
    %1308 = vmatpush2.msra.mxu0 0.0
    %1309 = vmatprep.subr.mxu0 0.0
    %1310 = vmatpush2.msra.mxu0 0.0
    %1311 = vmatprep.subr.mxu0 0.0
    %1312 = vmatpush2.msra.mxu0 0.0
    %1313 = vmatprep.subr.mxu0 0.0
    %1314 = vmatpush2.msra.mxu0 0.0
    %1315 = vmatprep.subr.mxu0 0.0
    %1316 = vmatpush2.msra.mxu0 0.0
    %1317 = vmatprep.subr.mxu0 0.0
    %1318 = vmatpush2.msra.mxu0 0.0
    %1319 = vmatprep.subr.mxu0 0.0
    %1320 = vmatpush2.msra.mxu0 0.0
    %1321 = vmatprep.subr.mxu0 0.0
    %1322 = vmatpush2.msra.mxu0 0.0
    %1323 = vmatprep.subr.mxu0 0.0
    %1324 = vmatpush2.msra.mxu0 0.0
    %1325 = vmatprep.subr.mxu0 0.0
    %1326 = vmatpush2.msra.mxu0 0.0
    %1327 = vmatprep.subr.mxu0 0.0
    %1328 = vmatpush2.msra.mxu0 0.0
    %1329 = vmatprep.mubr.f32.mxu0 0.0
    %1330 = vmatmul.mubr.f32.gmra.mxu0 %v1234
    %v1331 = vpop.f32.mrf.mxu0
    %v1332 = vadd.f32 %v1263, %v1331
    %v1333 = vpop.f32.mrf.mxu0
    %1334 = vmatprep.mubr.f32.mxu0 0.0
    %1335 = vmatmul.mubr.f32.gmra.mxu0 %v1235
    %v1336 = vpop.f32.mrf.mxu0
    %v1337 = vadd.f32 %v1263, %v1336
    %v1338 = vpop.f32.mrf.mxu0
    %1339 = vmatprep.mubr.f32.mxu0 0.0
    %1340 = vmatmul.mubr.f32.gmra.mxu0 %v1236
    %v1341 = vpop.f32.mrf.mxu0
    %v1342 = vadd.f32 %v1263, %v1341
    %v1343 = vpop.f32.mrf.mxu0
    %1344 = vmatprep.mubr.f32.mxu0 0.0
    %1345 = vmatmul.mubr.f32.gmra.mxu0 %v1237
    %v1346 = vpop.f32.mrf.mxu0
    %v1347 = vadd.f32 %v1263, %v1346
    %v1348 = vpop.f32.mrf.mxu0
    %1349 = vmatprep.mubr.f32.mxu0 0.0
    %1350 = vmatmul.mubr.f32.gmra.mxu0 %v1238
    %v1351 = vpop.f32.mrf.mxu0
    %v1352 = vadd.f32 %v1263, %v1351
    %v1353 = vpop.f32.mrf.mxu0
    %1354 = vmatprep.mubr.f32.mxu0 0.0
    %1355 = vmatmul.mubr.f32.gmra.mxu0 %v1239
    %v1356 = vpop.f32.mrf.mxu0
    %v1357 = vadd.f32 %v1263, %v1356
    %v1358 = vpop.f32.mrf.mxu0
    %1359 = vmatprep.mubr.f32.mxu0 0.0
    %1360 = vmatmul.mubr.f32.gmra.mxu0 %v1240
    %v1361 = vpop.f32.mrf.mxu0
    %v1362 = vadd.f32 %v1263, %v1361
    %v1363 = vpop.f32.mrf.mxu0
    %1364 = vmatprep.mubr.f32.mxu0 0.0
    %1365 = vmatmul.mubr.f32.gmra.mxu0 %v1241
    %v1366 = vpop.f32.mrf.mxu0
    %v1367 = vadd.f32 %v1263, %v1366
    %v1368 = vpop.f32.mrf.mxu0
    %1369 = vdwg.mxu0
    %v1370 = vtanh.pop %v1332
    %v1371 = vtanh.pop %v1337
    %v1372 = vtanh.pop %v1342
    %v1373 = vtanh.pop %v1347
    %v1374 = vtanh.pop %v1352
    %v1375 = vtanh.pop %v1357
    %v1376 = vtanh.pop %v1362
    %v1377 = vtanh.pop %v1367
    %1378 = vst [vmem:[#allocation10] sm:$0xff] %v1370
    %1379 = vst [vmem:[#allocation10 + $0x8] sm:$0xff] %v1371
    %1380 = vst [vmem:[#allocation10 + $0x10] sm:$0xff] %v1372
    %1381 = vst [vmem:[#allocation10 + $0x18] sm:$0xff] %v1373
    %1382 = vst [vmem:[#allocation10 + $0x20] sm:$0xff] %v1374
    %1383 = vst [vmem:[#allocation10 + $0x28] sm:$0xff] %v1375
    %1384 = vst [vmem:[#allocation10 + $0x30] sm:$0xff] %v1376
    %1385 = vst [vmem:[#allocation10 + $0x38] sm:$0xff] %v1377
    %p1386 = scmp.eq.s32.totalorder 0, 0
    // Predicated region
    $region34: #{tpu_custom_call.1} parent=1 // pred_check
      %p1387 = pneg %p1386
    $region35: #{tpu_custom_call.1} parent=1 // pred_check_branch
      %1389 = sbr.rel (%p1387) target = $region37
    $region36: #{tpu_custom_call.1} parent=1 // pred_region
      %v1390 = vld [vmem:[#allocation4] sm:$0xff]
      %1391 = vst [vmem:[#allocation11] sm:$0xff] %v1390
    $region37: #{tpu_custom_call.1} parent=1 // pred_fallthru
      _
    // Predicated region
    $region38: #{tpu_custom_call.1} parent=1 // pred_check
      _
    $region39: #{tpu_custom_call.1} parent=1 // pred_check_branch
      %1393 = sbr.rel (0) target = $region41
    $region40: #{tpu_custom_call.1} parent=1 // pred_region
      %s1395 = ssub.s32 1024, 1024
      %1396 = vsyncadd [#allocation7], %s1395
      %s1397 = sshll.u32 [#allocation10], 4
      %s1398 = int_to_ptr.vmem [resolvable:$true] %s1397
      %1403 = dma.vmem_to_hbm [thread:$0]  %s1398, 1024, %s6, [#allocation7], 128, 128, 8
    $region41: #{tpu_custom_call.1} parent=1 // pred_fallthru
      _
    // Predicated region
    $region42: #{tpu_custom_call.1} parent=1 // pred_check
      _
    $region43: #{tpu_custom_call.1} parent=1 // pred_check_branch
      %1405 = sbr.rel (0) target = $region45
    $region44: #{tpu_custom_call.1} parent=1 // pred_region
      %s1407 = ssub.s32 128, 128
      %1408 = vsyncadd [#allocation12], %s1407
      %s1410 = sshll.u32 [#allocation11], 4
      %s1411 = int_to_ptr.vmem [resolvable:$true] %s1410
      %1413 = dma.vmem_to_hbm [thread:$0]  %s1411, 128, %s7, [#allocation12]
    $region45: #{tpu_custom_call.1} parent=1 // pred_fallthru
      _
    // Predicated region
    $region46: #{tpu_custom_call.1} parent=1 // pred_check
      _
    $region47: #{tpu_custom_call.1} parent=1 // pred_check_branch
      %1415 = sbr.rel (0) target = $region49
    $region48: #{tpu_custom_call.1} parent=1 // pred_region
      %1416 = dma.done [#allocation7], 1024
    $region49: #{tpu_custom_call.1} parent=1 // pred_fallthru
      _
    // Predicated region
    $region50: #{tpu_custom_call.1} parent=1 // pred_check
      _
    $region51: #{tpu_custom_call.1} parent=1 // pred_check_branch
      %1418 = sbr.rel (0) target = $region53
    $region52: #{tpu_custom_call.1} parent=1 // pred_region
      %1419 = dma.done [#allocation12], 128
    $region53: #{tpu_custom_call.1} parent=1 // pred_fallthru
      _
    %1420 = vsyncpa [#allocation6], 1
    %1421 = vsyncpa [#allocation9], 1
    %1422 = vsyncpa [#allocation7], 1
    %1423 = vsyncpa [#allocation12], 1

</llo_original>
